<compile_context>
chip_gen: v7x
topology: tpu7x:2x2x1
jax: 0.10.0
libtpu: 0.0.40
codegen_flags: <defaults>
</compile_context>

<pallas_src>
import jax
import jax.numpy as jnp
from jax.experimental import pallas as pl
from jax.experimental.pallas import tpu as pltpu

HIDDEN_CHANNEL = 4
C1 = HIDDEN_CHANNEL * 16     # 64  conv1 out channels
C2 = HIDDEN_CHANNEL * 8      # 32  conv2 out channels (== fc1 input width)
C3 = HIDDEN_CHANNEL * 2      # 8   conv3 out channels
FC2_DIM = 81
FC3_DIM = 100
OUT_PAD = 128                # lane-dense padded output / slab width
G1_ROW = 8                   # row offset of the permuted fc1 weight in the f32 slab
FSLAB_ROWS = G1_ROW + 4 * C3  # 6 bias rows (+2 pad) + 32 rows of fc1 weight


def _full_spec(shape):
    """Whole-array VMEM block (block_shape == array shape, no grid)."""
    return pl.BlockSpec(shape, lambda *_: (0,) * len(shape))


def _wslab_layout(alphabet_size):
    """Row offsets of each weight inside the packed bf16 weight slab."""
    offs = {}
    r = 0

    def put(name, n):
        nonlocal r
        offs[name] = r
        r = -(-(r + n) // 16) * 16        # keep every block 16-row (bf16 tile) aligned

    put("w1", 6 * alphabet_size)          # block-diag conv1: 2 phases x (3*A, 64)
    put("w2", 3 * C1)                     # conv2: 3 taps x (64, 32)
    put("w3", 3 * C2)                     # conv3: 3 taps x (32, 8)
    put("fw2", C1)                        # fc2:   (64, 81)
    put("fw3", FC2_DIM)                   # fc3:   (81, 128) (zero padded)
    return offs, r


# ----------------------------------------------------------------------------
# Wrapper: one fused layout op on the raw input, one pallas_call, one slice.
# ----------------------------------------------------------------------------
def code_snippet_clf_forward(params, x_ncl):
    b, a, length = x_ncl.shape
    t1 = (length - 3) // 3 + 1                 # conv1 length
    t1p = t1 // 2                              # after pool
    t2p = ((t1p - 3) // 3 + 1) // 2            # conv2 + pool
    t3p = ((t2p - 3) // 3 + 1) // 2            # conv3 + pool
    # Shape invariants required by the fused stride arithmetic / torch view(-1, 32)
    assert t1 % 2 == 0 and t1p == 6 * t2p and t2p == 6 * t3p and t3p * C3 == C2

    offs, wrows = _wslab_layout(a)
    wslab, fslab = params["wslab"], params["fslab"]
    assert wslab.shape == (wrows, OUT_PAD) and fslab.shape == (FSLAB_ROWS, OUT_PAD)

    m1 = b * t1p                               # h1 rows (pooled conv1 positions)
    blk2 = b * t2p                             # rows per conv2 tap block / h2 rows
    blk3 = b * t3p                             # rows per conv3 tap block / h3 rows
    kpatch = 6 * a                             # (even|odd) x (tap) x (channel) lanes

    # NCL -> bf16 phase-concatenated patch matrix, rows permuted to
    # (t1p % 6, (t1p//6) % 6, j3, b) so every downstream conv tap / fc1 tap
    # reads a contiguous row block (no strided sublane gathers in-kernel).
    p = x_ncl[:, :, : t1 * 3].astype(jnp.bfloat16).transpose(0, 2, 1)   # (B, L, A)
    p = p.reshape(b, t3p, 6, 6, kpatch)        # (b, j3, r6', r6, [phase|tap|chan])
    patches = p.transpose(3, 2, 1, 0, 4).reshape(m1, kpatch)            # (B*T1p, 6A)

    f32, bf16 = jnp.float32, jnp.bfloat16

    def kernel(patch_ref, w_ref, f_ref, out_ref, h1_ref, h2_ref, h3_ref):
        # ---- conv1 + MaxPool1d(2) + ReLU: ONE block-diagonal matmul ---------
        y = jnp.dot(patch_ref[...], w_ref[offs["w1"]:offs["w1"] + kpatch, :],
                    preferred_element_type=f32)                  # (m1, 128)
        y = jnp.maximum(y[:, 0:C1], y[:, C1:2 * C1])             # pool over phases
        h1_ref[...] = jnp.maximum(y + f_ref[0:1, 0:C1], 0.0).astype(bf16)

        # ---- stride-3 conv as 3 tap matmuls over CONTIGUOUS row blocks -------
        def tap_sum(src_ref, w_row, k_rows, n_out, blk, phase, cast_lhs):
            acc = None
            for k in range(3):
                lhs = src_ref[(3 * phase + k) * blk:(3 * phase + k + 1) * blk, :]
                if cast_lhs:
                    lhs = lhs.astype(bf16)
                rhs = w_ref[w_row + k * k_rows:w_row + (k + 1) * k_rows, 0:n_out]
                part = jnp.dot(lhs, rhs, preferred_element_type=f32)
                acc = part if acc is None else acc + part
            return acc

        # ---- conv2 + pool + relu --------------------------------------------
        e0 = tap_sum(h1_ref, offs["w2"], C1, C2, blk2, 0, False)
        e1 = tap_sum(h1_ref, offs["w2"], C1, C2, blk2, 1, False)
        h2_ref[...] = jnp.maximum(jnp.maximum(e0, e1) + f_ref[1:2, 0:C2], 0.0)

        # ---- conv3 + pool + relu --------------------------------------------
        e0 = tap_sum(h2_ref, offs["w3"], C2, C3, blk3, 0, True)
        e1 = tap_sum(h2_ref, offs["w3"], C2, C3, blk3, 1, True)
        h3_ref[...] = jnp.maximum(jnp.maximum(e0, e1) + f_ref[2:3, 0:C3], 0.0)

        # ---- fc1: consumes torch's channel-major x.view(-1, 32) via 4 per-time
        # tap dots on contiguous (batch, C3) blocks with host-permuted weights.
        a1 = None
        for t in range(4):
            lhs = h3_ref[t * b:(t + 1) * b, :].astype(bf16)
            rhs = f_ref[G1_ROW + t * C3:G1_ROW + (t + 1) * C3, 0:C1].astype(bf16)
            part = jnp.dot(lhs, rhs, preferred_element_type=f32)
            a1 = part if a1 is None else a1 + part
        a1 = jnp.maximum(a1 + f_ref[3:4, 0:C1], 0.0)

        # ---- fc2 -> relu -> (Dropout(0.2)=identity in eval) -> fc3 -> sigmoid
        a2 = jnp.dot(a1.astype(bf16), w_ref[offs["fw2"]:offs["fw2"] + C1, 0:FC2_DIM],
                     preferred_element_type=f32)
        a2 = jnp.maximum(a2 + f_ref[4:5, 0:FC2_DIM], 0.0)
        z = jnp.dot(a2.astype(bf16), w_ref[offs["fw3"]:offs["fw3"] + FC2_DIM, :],
                    preferred_element_type=f32) + f_ref[5:6, :]
        out_ref[...] = 1.0 / (1.0 + jnp.exp(-z))                 # exact sigmoid

    out_padded = pl.pallas_call(
        kernel,
        out_shape=jax.ShapeDtypeStruct((b, OUT_PAD), jnp.float32),
        in_specs=[_full_spec((m1, kpatch)),
                  _full_spec(wslab.shape),
                  _full_spec(fslab.shape)],
        out_specs=_full_spec((b, OUT_PAD)),
        scratch_shapes=[
            pltpu.VMEM((m1, C1), jnp.bfloat16),   # pooled conv1 activations (re-read 6x)
            pltpu.VMEM((blk2, C2), jnp.float32),  # pooled conv2 activations
            pltpu.VMEM((blk3, C3), jnp.float32),  # pooled conv3 activations
        ],
    )(patches, wslab, fslab)
    return out_padded[:, :FC3_DIM]                # drop zero-padded lanes


# ----------------------------------------------------------------------------
# Parameters: raw torch-layout tensors + kernel-ready packed slabs
# ----------------------------------------------------------------------------
def init_raw_params(key, alphabet_size, scale=0.1):
    shapes = {
        "conv1_w": (C1, alphabet_size, 3), "conv1_b": (C1,),
        "conv2_w": (C2, C1, 3),            "conv2_b": (C2,),
        "conv3_w": (C3, C2, 3),            "conv3_b": (C3,),
        "fc1_w": (C1, C2),        "fc1_b": (C1,),          # Linear(32, 64)
        "fc2_w": (FC2_DIM, C1),   "fc2_b": (FC2_DIM,),     # Linear(64, 81)
        "fc3_w": (FC3_DIM, FC2_DIM), "fc3_b": (FC3_DIM,),  # Linear(81, 100)
    }
    keys = jax.random.split(key, len(shapes))
    return {n: scale * jax.random.normal(k, s, dtype=jnp.float32)
            for (n, s), k in zip(shapes.items(), keys)}


def prepare_params(raw):
    a = raw["conv1_w"].shape[1]
    offs, nrows = _wslab_layout(a)

    def taps(w):  # torch (O, C, K) -> (K, C, O): per-tap (C, O) matrices
        return jnp.transpose(w, (2, 1, 0))

    # --- bf16 weight slab (everything the MXU multiplies by, 128 lanes wide) ---
    w1 = taps(raw["conv1_w"]).reshape(3 * a, C1)          # rows (tap, channel)
    slab = jnp.zeros((nrows, OUT_PAD), jnp.float32)
    o = offs["w1"]                                        # block-diag [[W,0],[0,W]]
    slab = slab.at[o:o + 3 * a, 0:C1].set(w1)             # even pool phase
    slab = slab.at[o + 3 * a:o + 6 * a, C1:2 * C1].set(w1)  # odd pool phase
    o = offs["w2"]
    slab = slab.at[o:o + 3 * C1, 0:C2].set(taps(raw["conv2_w"]).reshape(3 * C1, C2))
    o = offs["w3"]
    slab = slab.at[o:o + 3 * C2, 0:C3].set(taps(raw["conv3_w"]).reshape(3 * C2, C3))
    o = offs["fw2"]
    slab = slab.at[o:o + C1, 0:FC2_DIM].set(raw["fc2_w"].T)
    o = offs["fw3"]
    slab = slab.at[o:o + FC2_DIM, 0:FC3_DIM].set(raw["fc3_w"].T)   # 100 -> 128 pad

    # --- f32 slab: biases + permuted fc1 weight (8-row-aligned tap blocks) ----
    fslab = jnp.zeros((FSLAB_ROWS, OUT_PAD), jnp.float32)
    fslab = fslab.at[0, 0:C1].set(raw["conv1_b"])
    fslab = fslab.at[1, 0:C2].set(raw["conv2_b"])
    fslab = fslab.at[2, 0:C3].set(raw["conv3_b"])
    fslab = fslab.at[3, 0:C1].set(raw["fc1_b"])
    fslab = fslab.at[4, 0:FC2_DIM].set(raw["fc2_b"])
    fslab = fslab.at[5, 0:FC3_DIM].set(raw["fc3_b"])
    # g1[t*8 + c, o] = fc1_w[o, c*4 + t]: reproduces torch's channel-major view(-1,32)
    g1 = jnp.transpose(raw["fc1_w"].reshape(C1, C3, 4), (2, 1, 0)).reshape(4 * C3, C1)
    fslab = fslab.at[G1_ROW:G1_ROW + 4 * C3, 0:C1].set(g1)

    return {"wslab": slab.astype(jnp.bfloat16), "fslab": fslab}


# ----------------------------------------------------------------------------
# Pure-JAX f32 reference (mirrors the PyTorch module, eval mode)
# ----------------------------------------------------------------------------
def forward_reference(raw, x_ncl):
    def conv1d_s3(x, w, bias):                 # Conv1d(kernel=3, stride=3)
        bb, c, l = x.shape
        t = (l - 3) // 3 + 1
        p = x[:, :, : t * 3].reshape(bb, c, t, 3)
        return jnp.einsum("bctk,ock->bot", p, w) + bias[None, :, None]

    def pool_relu(y):                          # relu(MaxPool1d(2, 2)(y))
        bb, o, t = y.shape
        return jnp.maximum(y.reshape(bb, o, t // 2, 2).max(axis=-1), 0.0)

    h = pool_relu(conv1d_s3(x_ncl, raw["conv1_w"], raw["conv1_b"]))
    h = pool_relu(conv1d_s3(h, raw["conv2_w"], raw["conv2_b"]))
    h = pool_relu(conv1d_s3(h, raw["conv3_w"], raw["conv3_b"]))
    z = h.reshape(-1, C2)                      # torch x.view(-1, 32)
    z = jnp.maximum(z @ raw["fc1_w"].T + raw["fc1_b"], 0.0)
    z = jnp.maximum(z @ raw["fc2_w"].T + raw["fc2_b"], 0.0)
    z = z @ raw["fc3_w"].T + raw["fc3_b"]      # Dropout(0.2): identity in eval
    return jax.nn.sigmoid(z)


if __name__ == "__main__":
    key = jax.random.PRNGKey(0)
    k_param, k_x = jax.random.split(key)

    ALPHABET = 32
    BATCH = 2
    # 864 -conv1/s3-> 288 -pool-> 144 -conv2/s3-> 48 -pool-> 24
    #     -conv3/s3->   8 -pool->   4 ; 8 channels * 4 length = 32 = fc1 input.
    SEQ_LEN = 864

    raw = init_raw_params(k_param, ALPHABET)
    params = prepare_params(raw)
    x = jax.random.normal(k_x, (BATCH, ALPHABET, SEQ_LEN), dtype=jnp.float32)

    out = jax.jit(code_snippet_clf_forward)(params, x)
    out = jax.block_until_ready(out)

    assert out.shape == (BATCH, FC3_DIM), out.shape
    assert bool(jnp.all(jnp.isfinite(out)))
    assert bool(jnp.all((out >= 0.0) & (out <= 1.0)))      # sigmoid range

    ref = forward_reference(raw, x)
    max_err = float(jnp.max(jnp.abs(out - ref)))
    assert max_err < 2e-2, f"max abs err vs f32 reference: {max_err}"

    print("KERNEL_OK")
</pallas_src>

<mosaic_0001>
module attributes {stable_mosaic.version = 11 : i64} {
  func.func @kernel(%arg0: memref<288x192xbf16, #tpu.memory_space<vmem>>, %arg1: memref<640x128xbf16, #tpu.memory_space<vmem>>, %arg2: memref<40x128xf32, #tpu.memory_space<vmem>>, %arg3: memref<2x128xf32, #tpu.memory_space<vmem>>, %arg4: memref<288x64xbf16, #tpu.memory_space<vmem>>, %arg5: memref<48x32xf32, #tpu.memory_space<vmem>>, %arg6: memref<8x8xf32, #tpu.memory_space<vmem>>) attributes {dimension_semantics = [], scalar_prefetch = 0 : i64, scratch_operands = 3 : i64, tpu.core_type = #tpu.core_type<tc>} {
    %c0 = arith.constant 0 : index
    %c0_0 = arith.constant 0 : index
    %0 = vector.load %arg0[%c0, %c0_0] : memref<288x192xbf16, #tpu.memory_space<vmem>>, vector<288x192xbf16>
    %c0_1 = arith.constant 0 : index
    %c0_2 = arith.constant 0 : index
    %1 = vector.load %arg1[%c0_1, %c0_2] : memref<640x128xbf16, #tpu.memory_space<vmem>>, vector<192x128xbf16>
    %cst = arith.constant dense<0.000000e+00> : vector<288x128xf32>
    %2 = tpu.matmul %0, %1, %cst {dimension_numbers = #tpu.dot_dimension_numbers<[1], [0], [0], [1], [0, 0, 1, 1], [], []>} : vector<288x192xbf16>, vector<192x128xbf16>, vector<288x128xf32> -> vector<288x128xf32>
    %3 = vector.extract_strided_slice %2 {offsets = [0, 0], sizes = [288, 64], strides = [1, 1]} : vector<288x128xf32> to vector<288x64xf32>
    %4 = vector.extract_strided_slice %2 {offsets = [0, 64], sizes = [288, 64], strides = [1, 1]} : vector<288x128xf32> to vector<288x64xf32>
    %5 = arith.maximumf %3, %4 : vector<288x64xf32>
    %c0_3 = arith.constant 0 : index
    %c0_4 = arith.constant 0 : index
    %6 = vector.load %arg2[%c0_3, %c0_4] : memref<40x128xf32, #tpu.memory_space<vmem>>, vector<1x64xf32>
    %7 = vector.broadcast %6 : vector<1x64xf32> to vector<288x64xf32>
    %8 = arith.addf %5, %7 : vector<288x64xf32>
    %cst_5 = arith.constant 0.000000e+00 : f32
    %9 = vector.broadcast %cst_5 : f32 to vector<288x64xf32>
    %10 = arith.maximumf %8, %9 : vector<288x64xf32>
    %11 = arith.truncf %10 : vector<288x64xf32> to vector<288x64xbf16>
    %c0_6 = arith.constant 0 : index
    %c0_7 = arith.constant 0 : index
    %12 = vector.load %arg4[%c0_6, %c0_7] : memref<288x64xbf16, #tpu.memory_space<vmem>>, vector<288x64xbf16>
    tpu.vector_store %arg4[%c0_6, %c0_7], %11 {strides = array<i32>} : memref<288x64xbf16, #tpu.memory_space<vmem>>, vector<288x64xbf16>,
    %c0_8 = arith.constant 0 : index
    %c0_9 = arith.constant 0 : index
    %13 = vector.load %arg4[%c0_8, %c0_9] : memref<288x64xbf16, #tpu.memory_space<vmem>>, vector<48x64xbf16>
    %c192 = arith.constant 192 : index
    %c0_10 = arith.constant 0 : index
    %14 = vector.load %arg1[%c192, %c0_10] : memref<640x128xbf16, #tpu.memory_space<vmem>>, vector<64x32xbf16>
    %cst_11 = arith.constant dense<0.000000e+00> : vector<48x32xf32>
    %15 = tpu.matmul %13, %14, %cst_11 {dimension_numbers = #tpu.dot_dimension_numbers<[1], [0], [0], [1], [0, 0, 1, 1], [], []>} : vector<48x64xbf16>, vector<64x32xbf16>, vector<48x32xf32> -> vector<48x32xf32>
    %c48 = arith.constant 48 : index
    %c0_12 = arith.constant 0 : index
    %16 = vector.load %arg4[%c48, %c0_12] : memref<288x64xbf16, #tpu.memory_space<vmem>>, vector<48x64xbf16>
    %c256 = arith.constant 256 : index
    %c0_13 = arith.constant 0 : index
    %17 = vector.load %arg1[%c256, %c0_13] : memref<640x128xbf16, #tpu.memory_space<vmem>>, vector<64x32xbf16>
    %cst_14 = arith.constant dense<0.000000e+00> : vector<48x32xf32>
    %18 = tpu.matmul %16, %17, %cst_14 {dimension_numbers = #tpu.dot_dimension_numbers<[1], [0], [0], [1], [0, 0, 1, 1], [], []>} : vector<48x64xbf16>, vector<64x32xbf16>, vector<48x32xf32> -> vector<48x32xf32>
    %19 = arith.addf %15, %18 : vector<48x32xf32>
    %c96 = arith.constant 96 : index
    %c0_15 = arith.constant 0 : index
    %20 = vector.load %arg4[%c96, %c0_15] : memref<288x64xbf16, #tpu.memory_space<vmem>>, vector<48x64xbf16>
    %c320 = arith.constant 320 : index
    %c0_16 = arith.constant 0 : index
    %21 = vector.load %arg1[%c320, %c0_16] : memref<640x128xbf16, #tpu.memory_space<vmem>>, vector<64x32xbf16>
    %cst_17 = arith.constant dense<0.000000e+00> : vector<48x32xf32>
    %22 = tpu.matmul %20, %21, %cst_17 {dimension_numbers = #tpu.dot_dimension_numbers<[1], [0], [0], [1], [0, 0, 1, 1], [], []>} : vector<48x64xbf16>, vector<64x32xbf16>, vector<48x32xf32> -> vector<48x32xf32>
    %23 = arith.addf %19, %22 : vector<48x32xf32>
    %c144 = arith.constant 144 : index
    %c0_18 = arith.constant 0 : index
    %24 = vector.load %arg4[%c144, %c0_18] : memref<288x64xbf16, #tpu.memory_space<vmem>>, vector<48x64xbf16>
    %c192_19 = arith.constant 192 : index
    %c0_20 = arith.constant 0 : index
    %25 = vector.load %arg1[%c192_19, %c0_20] : memref<640x128xbf16, #tpu.memory_space<vmem>>, vector<64x32xbf16>
    %cst_21 = arith.constant dense<0.000000e+00> : vector<48x32xf32>
    %26 = tpu.matmul %24, %25, %cst_21 {dimension_numbers = #tpu.dot_dimension_numbers<[1], [0], [0], [1], [0, 0, 1, 1], [], []>} : vector<48x64xbf16>, vector<64x32xbf16>, vector<48x32xf32> -> vector<48x32xf32>
    %c192_22 = arith.constant 192 : index
    %c0_23 = arith.constant 0 : index
    %27 = vector.load %arg4[%c192_22, %c0_23] : memref<288x64xbf16, #tpu.memory_space<vmem>>, vector<48x64xbf16>
    %c256_24 = arith.constant 256 : index
    %c0_25 = arith.constant 0 : index
    %28 = vector.load %arg1[%c256_24, %c0_25] : memref<640x128xbf16, #tpu.memory_space<vmem>>, vector<64x32xbf16>
    %cst_26 = arith.constant dense<0.000000e+00> : vector<48x32xf32>
    %29 = tpu.matmul %27, %28, %cst_26 {dimension_numbers = #tpu.dot_dimension_numbers<[1], [0], [0], [1], [0, 0, 1, 1], [], []>} : vector<48x64xbf16>, vector<64x32xbf16>, vector<48x32xf32> -> vector<48x32xf32>
    %30 = arith.addf %26, %29 : vector<48x32xf32>
    %c240 = arith.constant 240 : index
    %c0_27 = arith.constant 0 : index
    %31 = vector.load %arg4[%c240, %c0_27] : memref<288x64xbf16, #tpu.memory_space<vmem>>, vector<48x64xbf16>
    %c320_28 = arith.constant 320 : index
    %c0_29 = arith.constant 0 : index
    %32 = vector.load %arg1[%c320_28, %c0_29] : memref<640x128xbf16, #tpu.memory_space<vmem>>, vector<64x32xbf16>
    %cst_30 = arith.constant dense<0.000000e+00> : vector<48x32xf32>
    %33 = tpu.matmul %31, %32, %cst_30 {dimension_numbers = #tpu.dot_dimension_numbers<[1], [0], [0], [1], [0, 0, 1, 1], [], []>} : vector<48x64xbf16>, vector<64x32xbf16>, vector<48x32xf32> -> vector<48x32xf32>
    %34 = arith.addf %30, %33 : vector<48x32xf32>
    %35 = arith.maximumf %23, %34 : vector<48x32xf32>
    %c1 = arith.constant 1 : index
    %c0_31 = arith.constant 0 : index
    %36 = vector.load %arg2[%c1, %c0_31] : memref<40x128xf32, #tpu.memory_space<vmem>>, vector<1x32xf32>
    %37 = vector.broadcast %36 : vector<1x32xf32> to vector<48x32xf32>
    %38 = arith.addf %35, %37 : vector<48x32xf32>
    %cst_32 = arith.constant 0.000000e+00 : f32
    %39 = vector.broadcast %cst_32 : f32 to vector<48x32xf32>
    %40 = arith.maximumf %38, %39 : vector<48x32xf32>
    %c0_33 = arith.constant 0 : index
    %c0_34 = arith.constant 0 : index
    %41 = vector.load %arg5[%c0_33, %c0_34] : memref<48x32xf32, #tpu.memory_space<vmem>>, vector<48x32xf32>
    tpu.vector_store %arg5[%c0_33, %c0_34], %40 {strides = array<i32>} : memref<48x32xf32, #tpu.memory_space<vmem>>, vector<48x32xf32>,
    %c0_35 = arith.constant 0 : index
    %c0_36 = arith.constant 0 : index
    %42 = vector.load %arg5[%c0_35, %c0_36] : memref<48x32xf32, #tpu.memory_space<vmem>>, vector<8x32xf32>
    %43 = arith.truncf %42 : vector<8x32xf32> to vector<8x32xbf16>
    %c384 = arith.constant 384 : index
    %c0_37 = arith.constant 0 : index
    %44 = vector.load %arg1[%c384, %c0_37] : memref<640x128xbf16, #tpu.memory_space<vmem>>, vector<32x8xbf16>
    %cst_38 = arith.constant dense<0.000000e+00> : vector<8x8xf32>
    %45 = tpu.matmul %43, %44, %cst_38 {dimension_numbers = #tpu.dot_dimension_numbers<[1], [0], [0], [1], [0, 0, 1, 1], [], []>} : vector<8x32xbf16>, vector<32x8xbf16>, vector<8x8xf32> -> vector<8x8xf32>
    %c8 = arith.constant 8 : index
    %c0_39 = arith.constant 0 : index
    %46 = vector.load %arg5[%c8, %c0_39] : memref<48x32xf32, #tpu.memory_space<vmem>>, vector<8x32xf32>
    %47 = arith.truncf %46 : vector<8x32xf32> to vector<8x32xbf16>
    %c416 = arith.constant 416 : index
    %c0_40 = arith.constant 0 : index
    %48 = vector.load %arg1[%c416, %c0_40] : memref<640x128xbf16, #tpu.memory_space<vmem>>, vector<32x8xbf16>
    %cst_41 = arith.constant dense<0.000000e+00> : vector<8x8xf32>
    %49 = tpu.matmul %47, %48, %cst_41 {dimension_numbers = #tpu.dot_dimension_numbers<[1], [0], [0], [1], [0, 0, 1, 1], [], []>} : vector<8x32xbf16>, vector<32x8xbf16>, vector<8x8xf32> -> vector<8x8xf32>
    %50 = arith.addf %45, %49 : vector<8x8xf32>
    %c16 = arith.constant 16 : index
    %c0_42 = arith.constant 0 : index
    %51 = vector.load %arg5[%c16, %c0_42] : memref<48x32xf32, #tpu.memory_space<vmem>>, vector<8x32xf32>
    %52 = arith.truncf %51 : vector<8x32xf32> to vector<8x32xbf16>
    %c448 = arith.constant 448 : index
    %c0_43 = arith.constant 0 : index
    %53 = vector.load %arg1[%c448, %c0_43] : memref<640x128xbf16, #tpu.memory_space<vmem>>, vector<32x8xbf16>
    %cst_44 = arith.constant dense<0.000000e+00> : vector<8x8xf32>
    %54 = tpu.matmul %52, %53, %cst_44 {dimension_numbers = #tpu.dot_dimension_numbers<[1], [0], [0], [1], [0, 0, 1, 1], [], []>} : vector<8x32xbf16>, vector<32x8xbf16>, vector<8x8xf32> -> vector<8x8xf32>
    %55 = arith.addf %50, %54 : vector<8x8xf32>
    %c24 = arith.constant 24 : index
    %c0_45 = arith.constant 0 : index
    %56 = vector.load %arg5[%c24, %c0_45] : memref<48x32xf32, #tpu.memory_space<vmem>>, vector<8x32xf32>
    %57 = arith.truncf %56 : vector<8x32xf32> to vector<8x32xbf16>
    %c384_46 = arith.constant 384 : index
    %c0_47 = arith.constant 0 : index
    %58 = vector.load %arg1[%c384_46, %c0_47] : memref<640x128xbf16, #tpu.memory_space<vmem>>, vector<32x8xbf16>
    %cst_48 = arith.constant dense<0.000000e+00> : vector<8x8xf32>
    %59 = tpu.matmul %57, %58, %cst_48 {dimension_numbers = #tpu.dot_dimension_numbers<[1], [0], [0], [1], [0, 0, 1, 1], [], []>} : vector<8x32xbf16>, vector<32x8xbf16>, vector<8x8xf32> -> vector<8x8xf32>
    %c32 = arith.constant 32 : index
    %c0_49 = arith.constant 0 : index
    %60 = vector.load %arg5[%c32, %c0_49] : memref<48x32xf32, #tpu.memory_space<vmem>>, vector<8x32xf32>
    %61 = arith.truncf %60 : vector<8x32xf32> to vector<8x32xbf16>
    %c416_50 = arith.constant 416 : index
    %c0_51 = arith.constant 0 : index
    %62 = vector.load %arg1[%c416_50, %c0_51] : memref<640x128xbf16, #tpu.memory_space<vmem>>, vector<32x8xbf16>
    %cst_52 = arith.constant dense<0.000000e+00> : vector<8x8xf32>
    %63 = tpu.matmul %61, %62, %cst_52 {dimension_numbers = #tpu.dot_dimension_numbers<[1], [0], [0], [1], [0, 0, 1, 1], [], []>} : vector<8x32xbf16>, vector<32x8xbf16>, vector<8x8xf32> -> vector<8x8xf32>
    %64 = arith.addf %59, %63 : vector<8x8xf32>
    %c40 = arith.constant 40 : index
    %c0_53 = arith.constant 0 : index
    %65 = vector.load %arg5[%c40, %c0_53] : memref<48x32xf32, #tpu.memory_space<vmem>>, vector<8x32xf32>
    %66 = arith.truncf %65 : vector<8x32xf32> to vector<8x32xbf16>
    %c448_54 = arith.constant 448 : index
    %c0_55 = arith.constant 0 : index
    %67 = vector.load %arg1[%c448_54, %c0_55] : memref<640x128xbf16, #tpu.memory_space<vmem>>, vector<32x8xbf16>
    %cst_56 = arith.constant dense<0.000000e+00> : vector<8x8xf32>
    %68 = tpu.matmul %66, %67, %cst_56 {dimension_numbers = #tpu.dot_dimension_numbers<[1], [0], [0], [1], [0, 0, 1, 1], [], []>} : vector<8x32xbf16>, vector<32x8xbf16>, vector<8x8xf32> -> vector<8x8xf32>
    %69 = arith.addf %64, %68 : vector<8x8xf32>
    %70 = arith.maximumf %55, %69 : vector<8x8xf32>
    %c2 = arith.constant 2 : index
    %c0_57 = arith.constant 0 : index
    %71 = vector.load %arg2[%c2, %c0_57] : memref<40x128xf32, #tpu.memory_space<vmem>>, vector<1x8xf32>
    %72 = vector.broadcast %71 : vector<1x8xf32> to vector<8x8xf32>
    %73 = arith.addf %70, %72 : vector<8x8xf32>
    %cst_58 = arith.constant 0.000000e+00 : f32
    %74 = vector.broadcast %cst_58 : f32 to vector<8x8xf32>
    %75 = arith.maximumf %73, %74 : vector<8x8xf32>
    %c0_59 = arith.constant 0 : index
    %c0_60 = arith.constant 0 : index
    %76 = vector.load %arg6[%c0_59, %c0_60] : memref<8x8xf32, #tpu.memory_space<vmem>>, vector<8x8xf32>
    tpu.vector_store %arg6[%c0_59, %c0_60], %75 {strides = array<i32>} : memref<8x8xf32, #tpu.memory_space<vmem>>, vector<8x8xf32>,
    %c0_61 = arith.constant 0 : index
    %c0_62 = arith.constant 0 : index
    %77 = vector.load %arg6[%c0_61, %c0_62] : memref<8x8xf32, #tpu.memory_space<vmem>>, vector<2x8xf32>
    %78 = arith.truncf %77 : vector<2x8xf32> to vector<2x8xbf16>
    %c8_63 = arith.constant 8 : index
    %c0_64 = arith.constant 0 : index
    %79 = vector.load %arg2[%c8_63, %c0_64] : memref<40x128xf32, #tpu.memory_space<vmem>>, vector<8x64xf32>
    %80 = arith.truncf %79 : vector<8x64xf32> to vector<8x64xbf16>
    %cst_65 = arith.constant dense<0.000000e+00> : vector<2x64xf32>
    %81 = tpu.matmul %78, %80, %cst_65 {dimension_numbers = #tpu.dot_dimension_numbers<[1], [0], [0], [1], [0, 0, 1, 1], [], []>} : vector<2x8xbf16>, vector<8x64xbf16>, vector<2x64xf32> -> vector<2x64xf32>
    %c2_66 = arith.constant 2 : index
    %c0_67 = arith.constant 0 : index
    %82 = vector.load %arg6[%c2_66, %c0_67] : memref<8x8xf32, #tpu.memory_space<vmem>>, vector<2x8xf32>
    %83 = arith.truncf %82 : vector<2x8xf32> to vector<2x8xbf16>
    %c16_68 = arith.constant 16 : index
    %c0_69 = arith.constant 0 : index
    %84 = vector.load %arg2[%c16_68, %c0_69] : memref<40x128xf32, #tpu.memory_space<vmem>>, vector<8x64xf32>
    %85 = arith.truncf %84 : vector<8x64xf32> to vector<8x64xbf16>
    %cst_70 = arith.constant dense<0.000000e+00> : vector<2x64xf32>
    %86 = tpu.matmul %83, %85, %cst_70 {dimension_numbers = #tpu.dot_dimension_numbers<[1], [0], [0], [1], [0, 0, 1, 1], [], []>} : vector<2x8xbf16>, vector<8x64xbf16>, vector<2x64xf32> -> vector<2x64xf32>
    %87 = arith.addf %81, %86 : vector<2x64xf32>
    %c4 = arith.constant 4 : index
    %c0_71 = arith.constant 0 : index
    %88 = vector.load %arg6[%c4, %c0_71] : memref<8x8xf32, #tpu.memory_space<vmem>>, vector<2x8xf32>
    %89 = arith.truncf %88 : vector<2x8xf32> to vector<2x8xbf16>
    %c24_72 = arith.constant 24 : index
    %c0_73 = arith.constant 0 : index
    %90 = vector.load %arg2[%c24_72, %c0_73] : memref<40x128xf32, #tpu.memory_space<vmem>>, vector<8x64xf32>
    %91 = arith.truncf %90 : vector<8x64xf32> to vector<8x64xbf16>
    %cst_74 = arith.constant dense<0.000000e+00> : vector<2x64xf32>
    %92 = tpu.matmul %89, %91, %cst_74 {dimension_numbers = #tpu.dot_dimension_numbers<[1], [0], [0], [1], [0, 0, 1, 1], [], []>} : vector<2x8xbf16>, vector<8x64xbf16>, vector<2x64xf32> -> vector<2x64xf32>
    %93 = arith.addf %87, %92 : vector<2x64xf32>
    %c6 = arith.constant 6 : index
    %c0_75 = arith.constant 0 : index
    %94 = vector.load %arg6[%c6, %c0_75] : memref<8x8xf32, #tpu.memory_space<vmem>>, vector<2x8xf32>
    %95 = arith.truncf %94 : vector<2x8xf32> to vector<2x8xbf16>
    %c32_76 = arith.constant 32 : index
    %c0_77 = arith.constant 0 : index
    %96 = vector.load %arg2[%c32_76, %c0_77] : memref<40x128xf32, #tpu.memory_space<vmem>>, vector<8x64xf32>
    %97 = arith.truncf %96 : vector<8x64xf32> to vector<8x64xbf16>
    %cst_78 = arith.constant dense<0.000000e+00> : vector<2x64xf32>
    %98 = tpu.matmul %95, %97, %cst_78 {dimension_numbers = #tpu.dot_dimension_numbers<[1], [0], [0], [1], [0, 0, 1, 1], [], []>} : vector<2x8xbf16>, vector<8x64xbf16>, vector<2x64xf32> -> vector<2x64xf32>
    %99 = arith.addf %93, %98 : vector<2x64xf32>
    %c3 = arith.constant 3 : index
    %c0_79 = arith.constant 0 : index
    %100 = vector.load %arg2[%c3, %c0_79] : memref<40x128xf32, #tpu.memory_space<vmem>>, vector<1x64xf32>
    %101 = vector.broadcast %100 : vector<1x64xf32> to vector<2x64xf32>
    %102 = arith.addf %99, %101 : vector<2x64xf32>
    %cst_80 = arith.constant 0.000000e+00 : f32
    %103 = vector.broadcast %cst_80 : f32 to vector<2x64xf32>
    %104 = arith.maximumf %102, %103 : vector<2x64xf32>
    %105 = arith.truncf %104 : vector<2x64xf32> to vector<2x64xbf16>
    %c480 = arith.constant 480 : index
    %c0_81 = arith.constant 0 : index
    %106 = vector.load %arg1[%c480, %c0_81] : memref<640x128xbf16, #tpu.memory_space<vmem>>, vector<64x81xbf16>
    %cst_82 = arith.constant dense<0.000000e+00> : vector<2x81xf32>
    %107 = tpu.matmul %105, %106, %cst_82 {dimension_numbers = #tpu.dot_dimension_numbers<[1], [0], [0], [1], [0, 0, 1, 1], [], []>} : vector<2x64xbf16>, vector<64x81xbf16>, vector<2x81xf32> -> vector<2x81xf32>
    %c4_83 = arith.constant 4 : index
    %c0_84 = arith.constant 0 : index
    %108 = vector.load %arg2[%c4_83, %c0_84] : memref<40x128xf32, #tpu.memory_space<vmem>>, vector<1x81xf32>
    %109 = vector.broadcast %108 : vector<1x81xf32> to vector<2x81xf32>
    %110 = arith.addf %107, %109 : vector<2x81xf32>
    %cst_85 = arith.constant 0.000000e+00 : f32
    %111 = vector.broadcast %cst_85 : f32 to vector<2x81xf32>
    %112 = arith.maximumf %110, %111 : vector<2x81xf32>
    %113 = arith.truncf %112 : vector<2x81xf32> to vector<2x81xbf16>
    %c544 = arith.constant 544 : index
    %c0_86 = arith.constant 0 : index
    %114 = vector.load %arg1[%c544, %c0_86] : memref<640x128xbf16, #tpu.memory_space<vmem>>, vector<81x128xbf16>
    %cst_87 = arith.constant dense<0.000000e+00> : vector<2x128xf32>
    %115 = tpu.matmul %113, %114, %cst_87 {dimension_numbers = #tpu.dot_dimension_numbers<[1], [0], [0], [1], [0, 0, 1, 1], [], []>} : vector<2x81xbf16>, vector<81x128xbf16>, vector<2x128xf32> -> vector<2x128xf32>
    %c5 = arith.constant 5 : index
    %c0_88 = arith.constant 0 : index
    %116 = vector.load %arg2[%c5, %c0_88] : memref<40x128xf32, #tpu.memory_space<vmem>>, vector<1x128xf32>
    %117 = vector.broadcast %116 : vector<1x128xf32> to vector<2x128xf32>
    %118 = arith.addf %115, %117 : vector<2x128xf32>
    %cst_89 = arith.constant 0.000000e+00 : f32
    %119 = vector.broadcast %cst_89 : f32 to vector<2x128xf32>
    %120 = arith.subf %119, %118 : vector<2x128xf32>
    %121 = math.exp %120 : vector<2x128xf32>
    %cst_90 = arith.constant 1.000000e+00 : f32
    %122 = vector.broadcast %cst_90 : f32 to vector<2x128xf32>
    %123 = arith.addf %122, %121 : vector<2x128xf32>
    %cst_91 = arith.constant 1.000000e+00 : f32
    %124 = vector.broadcast %cst_91 : f32 to vector<2x128xf32>
    %125 = arith.divf %124, %123 : vector<2x128xf32>
    %c0_92 = arith.constant 0 : index
    %c0_93 = arith.constant 0 : index
    %126 = vector.load %arg3[%c0_92, %c0_93] : memref<2x128xf32, #tpu.memory_space<vmem>>, vector<2x128xf32>
    tpu.vector_store %arg3[%c0_92, %c0_93], %125 {strides = array<i32>} : memref<2x128xf32, #tpu.memory_space<vmem>>, vector<2x128xf32>,
    return
  }
}

</mosaic_0001>

<llo_original>
// kernel: code_snippet_clf_forward.1
$region0: #{code_snippet_clf_forward.1}
  #allocation0 [shape = 'u32[]', space=smem, size = 0x4, offset = 0x4, fixed_abs, tag = 'smem constant byte address 0x4 - core index']
  #allocation1 [shape = 'u32[144,128]{1,0:T(1,128)}', space=vmem, size = 0x12000, scoped, tag = 'internal scratch']
  #allocation2 [shape = 'bf16[288,64]{1,0:T(16,128)(2,1)}', space=vmem, size = 0x12000, scoped, tag = 'scratch operand']
  #allocation3 [shape = 'f32[48,32]{1,0:T(8,128)}', space=vmem, size = 0x6000, scoped, tag = 'scratch operand']
  #allocation4 [shape = 'f32[8,8]{1,0:T(8,128)}', space=vmem, size = 0x1000, scoped, tag = 'scratch operand']
  %s0 = inlined_call_operand.vmem [shape: bf16[288,192], index: 0, kind: input, shape index: {}]
  %s1 = inlined_call_operand.vmem [shape: bf16[640,128], index: 1, kind: input, shape index: {}]
  %s2 = inlined_call_operand.vmem [shape: f32[40,128], index: 2, kind: input, shape index: {}]
  %s3 = inlined_call_operand.hbm [shape: f32[2,128], index: 3, kind: output, shape index: {}]
  %s4 = sld [smem:[#allocation0]]
  $region22: #{code_snippet_clf_forward.1} parent=0
    _
  %s6 = ssub.s32 1, %s4
  %s7 = scalar_select 0, %s6, %s4
  $region1: #{code_snippet_clf_forward.1} parent=0
    #allocation5 [shape = 'u8[1024]{0}', space=vmem, size = 0x400, scoped, tag = 'output window, operand 0, single buffered']
    #allocation6 [shape = 's32[1]{0}', space=sflag, size = 0x4, scoped, tag = 'scoped memory for code_snippet_clf_forward.1']
    %8 = vsyncpa [#allocation6], 0
    // Predicated region
    $region2: #{code_snippet_clf_forward.1} parent=1 // pred_check
      _
    $region3: #{code_snippet_clf_forward.1} parent=1 // pred_check_branch
      %10 = sbr.rel (0) target = $region5
    $region4: #{code_snippet_clf_forward.1} parent=1 // pred_region
      _
    $region5: #{code_snippet_clf_forward.1} parent=1 // pred_fallthru
      _
    // Predicated region
    $region6: #{code_snippet_clf_forward.1} parent=1 // pred_check
      _
    $region7: #{code_snippet_clf_forward.1} parent=1 // pred_check_branch
      %12 = sbr.rel (0) target = $region9
    $region8: #{code_snippet_clf_forward.1} parent=1 // pred_region
      _
    $region9: #{code_snippet_clf_forward.1} parent=1 // pred_fallthru
      _
    // Predicated region
    $region10: #{code_snippet_clf_forward.1} parent=1 // pred_check
      _
    $region11: #{code_snippet_clf_forward.1} parent=1 // pred_check_branch
      %14 = sbr.rel (0) target = $region13
    $region12: #{code_snippet_clf_forward.1} parent=1 // pred_region
      _
    $region13: #{code_snippet_clf_forward.1} parent=1 // pred_fallthru
      _
    %v16 = vld [vmem:[%s0] sm:$0xff]
    %v17 = vld [vmem:[%s0 + $0x8] sm:$0xff]
    %v18 = vld [vmem:[%s0 + $0x10] sm:$0xff]
    %v19 = vld [vmem:[%s0 + $0x18] sm:$0xff]
    %v20 = vld [vmem:[%s0 + $0x20] sm:$0xff]
    %v21 = vld [vmem:[%s0 + $0x28] sm:$0xff]
    %v22 = vld [vmem:[%s0 + $0x30] sm:$0xff]
    %v23 = vld [vmem:[%s0 + $0x38] sm:$0xff]
    %v24 = vld [vmem:[%s0 + $0x40] sm:$0xff]
    %v25 = vld [vmem:[%s0 + $0x48] sm:$0xff]
    %v26 = vld [vmem:[%s0 + $0x50] sm:$0xff]
    %v27 = vld [vmem:[%s0 + $0x58] sm:$0xff]
    %v28 = vld [vmem:[%s0 + $0x60] sm:$0xff]
    %v29 = vld [vmem:[%s0 + $0x68] sm:$0xff]
    %v30 = vld [vmem:[%s0 + $0x70] sm:$0xff]
    %v31 = vld [vmem:[%s0 + $0x78] sm:$0xff]
    %v32 = vld [vmem:[%s0 + $0x80] sm:$0xff]
    %v33 = vld [vmem:[%s0 + $0x88] sm:$0xff]
    %v34 = vld [vmem:[%s0 + $0x90] sm:$0xff]
    %v35 = vld [vmem:[%s0 + $0x98] sm:$0xff]
    %v36 = vld [vmem:[%s0 + $0xa0] sm:$0xff]
    %v37 = vld [vmem:[%s0 + $0xa8] sm:$0xff]
    %v38 = vld [vmem:[%s0 + $0xb0] sm:$0xff]
    %v39 = vld [vmem:[%s0 + $0xb8] sm:$0xff]
    %v40 = vld [vmem:[%s0 + $0xc0] sm:$0xff]
    %v41 = vld [vmem:[%s0 + $0xc8] sm:$0xff]
    %v42 = vld [vmem:[%s0 + $0xd0] sm:$0xff]
    %v43 = vld [vmem:[%s0 + $0xd8] sm:$0xff]
    %v44 = vld [vmem:[%s0 + $0xe0] sm:$0xff]
    %v45 = vld [vmem:[%s0 + $0xe8] sm:$0xff]
    %v46 = vld [vmem:[%s0 + $0xf0] sm:$0xff]
    %v47 = vld [vmem:[%s0 + $0xf8] sm:$0xff]
    %v48 = vld [vmem:[%s0 + $0x100] sm:$0xff]
    %v49 = vld [vmem:[%s0 + $0x108] sm:$0xff]
    %v50 = vld [vmem:[%s0 + $0x110] sm:$0xff]
    %v51 = vld [vmem:[%s0 + $0x118] sm:$0xff]
    %v52 = vld [vmem:[%s1] sm:$0xf]
    %v53 = vld [vmem:[%s1 + $0x4] sm:$0xf]
    %v54 = vld [vmem:[%s1 + $0x8] sm:$0xf]
    %v55 = vld [vmem:[%s1 + $0xc] sm:$0xf]
    %v56 = vld [vmem:[%s1 + $0x10] sm:$0xf]
    %v57 = vld [vmem:[%s1 + $0x14] sm:$0xf]
    %v58 = vld [vmem:[%s1 + $0x18] sm:$0xf]
    %v59 = vld [vmem:[%s1 + $0x1c] sm:$0xf]
    %v60 = vld [vmem:[%s1 + $0x20] sm:$0xf]
    %v61 = vld [vmem:[%s1 + $0x24] sm:$0xf]
    %v62 = vld [vmem:[%s1 + $0x28] sm:$0xf]
    %v63 = vld [vmem:[%s1 + $0x2c] sm:$0xf]
    %v64 = vld [vmem:[%s1 + $0x30] sm:$0xf]
    %v65 = vld [vmem:[%s1 + $0x34] sm:$0xf]
    %v66 = vld [vmem:[%s1 + $0x38] sm:$0xf]
    %v67 = vld [vmem:[%s1 + $0x3c] sm:$0xf]
    %v68 = vld [vmem:[%s1 + $0x40] sm:$0xf]
    %v69 = vld [vmem:[%s1 + $0x44] sm:$0xf]
    %v70 = vld [vmem:[%s1 + $0x48] sm:$0xf]
    %v71 = vld [vmem:[%s1 + $0x4c] sm:$0xf]
    %v72 = vld [vmem:[%s1 + $0x50] sm:$0xf]
    %v73 = vld [vmem:[%s1 + $0x54] sm:$0xf]
    %v74 = vld [vmem:[%s1 + $0x58] sm:$0xf]
    %v75 = vld [vmem:[%s1 + $0x5c] sm:$0xf]
    %v112 = vunpack.c.l.b16 %v16
    %v113 = vunpack.c.h.b16 %v16
    %v114 = vunpack.c.l.b16 %v17
    %v115 = vunpack.c.h.b16 %v17
    %v116 = vunpack.c.l.b16 %v18
    %v117 = vunpack.c.h.b16 %v18
    %v118 = vunpack.c.l.b16 %v19
    %v119 = vunpack.c.h.b16 %v19
    %v120 = vunpack.c.l.b16 %v20
    %v121 = vunpack.c.h.b16 %v20
    %v122 = vunpack.c.l.b16 %v21
    %v123 = vunpack.c.h.b16 %v21
    %v124 = vunpack.c.l.b16 %v22
    %v125 = vunpack.c.h.b16 %v22
    %v126 = vunpack.c.l.b16 %v23
    %v127 = vunpack.c.h.b16 %v23
    %v128 = vunpack.c.l.b16 %v24
    %v129 = vunpack.c.h.b16 %v24
    %v130 = vunpack.c.l.b16 %v25
    %v131 = vunpack.c.h.b16 %v25
    %v132 = vunpack.c.l.b16 %v26
    %v133 = vunpack.c.h.b16 %v26
    %v134 = vunpack.c.l.b16 %v27
    %v135 = vunpack.c.h.b16 %v27
    %v136 = vunpack.c.l.b16 %v28
    %v137 = vunpack.c.h.b16 %v28
    %v138 = vunpack.c.l.b16 %v29
    %v139 = vunpack.c.h.b16 %v29
    %v140 = vunpack.c.l.b16 %v30
    %v141 = vunpack.c.h.b16 %v30
    %v142 = vunpack.c.l.b16 %v31
    %v143 = vunpack.c.h.b16 %v31
    %v144 = vunpack.c.l.b16 %v32
    %v145 = vunpack.c.h.b16 %v32
    %v146 = vunpack.c.l.b16 %v33
    %v147 = vunpack.c.h.b16 %v33
    %v148 = vunpack.c.l.b16 %v34
    %v149 = vunpack.c.h.b16 %v34
    %v150 = vunpack.c.l.b16 %v35
    %v151 = vunpack.c.h.b16 %v35
    %v152 = vunpack.c.l.b16 %v36
    %v153 = vunpack.c.h.b16 %v36
    %v154 = vunpack.c.l.b16 %v37
    %v155 = vunpack.c.h.b16 %v37
    %v156 = vunpack.c.l.b16 %v38
    %v157 = vunpack.c.h.b16 %v38
    %v158 = vunpack.c.l.b16 %v39
    %v159 = vunpack.c.h.b16 %v39
    %v160 = vunpack.c.l.b16 %v40
    %v161 = vunpack.c.h.b16 %v40
    %v162 = vunpack.c.l.b16 %v41
    %v163 = vunpack.c.h.b16 %v41
    %v164 = vunpack.c.l.b16 %v42
    %v165 = vunpack.c.h.b16 %v42
    %v166 = vunpack.c.l.b16 %v43
    %v167 = vunpack.c.h.b16 %v43
    %v168 = vunpack.c.l.b16 %v44
    %v169 = vunpack.c.h.b16 %v44
    %v170 = vunpack.c.l.b16 %v45
    %v171 = vunpack.c.h.b16 %v45
    %v172 = vunpack.c.l.b16 %v46
    %v173 = vunpack.c.h.b16 %v46
    %v174 = vunpack.c.l.b16 %v47
    %v175 = vunpack.c.h.b16 %v47
    %v176 = vunpack.c.l.b16 %v48
    %v177 = vunpack.c.h.b16 %v48
    %v178 = vunpack.c.l.b16 %v49
    %v179 = vunpack.c.h.b16 %v49
    %v180 = vunpack.c.l.b16 %v50
    %v181 = vunpack.c.h.b16 %v50
    %v182 = vunpack.c.l.b16 %v51
    %v183 = vunpack.c.h.b16 %v51
    %v184 = vpack.c.b16 %v114, %v112
    %v185 = vpack.c.b16 %v115, %v113
    %v186 = vpack.c.b16 %v118, %v116
    %v187 = vpack.c.b16 %v119, %v117
    %v188 = vpack.c.b16 %v122, %v120
    %v189 = vpack.c.b16 %v123, %v121
    %v190 = vpack.c.b16 %v126, %v124
    %v191 = vpack.c.b16 %v127, %v125
    %v192 = vpack.c.b16 %v130, %v128
    %v193 = vpack.c.b16 %v131, %v129
    %v194 = vpack.c.b16 %v134, %v132
    %v195 = vpack.c.b16 %v135, %v133
    %v196 = vpack.c.b16 %v138, %v136
    %v197 = vpack.c.b16 %v139, %v137
    %v198 = vpack.c.b16 %v142, %v140
    %v199 = vpack.c.b16 %v143, %v141
    %v200 = vpack.c.b16 %v146, %v144
    %v201 = vpack.c.b16 %v147, %v145
    %v202 = vpack.c.b16 %v150, %v148
    %v203 = vpack.c.b16 %v151, %v149
    %v204 = vpack.c.b16 %v154, %v152
    %v205 = vpack.c.b16 %v155, %v153
    %v206 = vpack.c.b16 %v158, %v156
    %v207 = vpack.c.b16 %v159, %v157
    %v208 = vpack.c.b16 %v162, %v160
    %v209 = vpack.c.b16 %v163, %v161
    %v210 = vpack.c.b16 %v166, %v164
    %v211 = vpack.c.b16 %v167, %v165
    %v212 = vpack.c.b16 %v170, %v168
    %v213 = vpack.c.b16 %v171, %v169
    %v214 = vpack.c.b16 %v174, %v172
    %v215 = vpack.c.b16 %v175, %v173
    %v216 = vpack.c.b16 %v178, %v176
    %v217 = vpack.c.b16 %v179, %v177
    %v218 = vpack.c.b16 %v182, %v180
    %v219 = vpack.c.b16 %v183, %v181
    %v262 = vunpack.c.l.b16 %v52
    %v263 = vunpack.c.l.b16 %v53
    %v264 = vunpack.c.l.b16 %v54
    %v265 = vunpack.c.l.b16 %v55
    %v266 = vunpack.c.l.b16 %v56
    %v267 = vunpack.c.l.b16 %v57
    %v268 = vunpack.c.l.b16 %v58
    %v269 = vunpack.c.l.b16 %v59
    %v270 = vunpack.c.l.b16 %v60
    %v271 = vunpack.c.l.b16 %v61
    %v272 = vunpack.c.l.b16 %v62
    %v273 = vunpack.c.l.b16 %v63
    %v274 = vunpack.c.l.b16 %v64
    %v275 = vunpack.c.l.b16 %v65
    %v276 = vunpack.c.l.b16 %v66
    %v277 = vunpack.c.l.b16 %v67
    %v278 = vunpack.c.l.b16 %v68
    %v279 = vunpack.c.l.b16 %v69
    %v280 = vunpack.c.l.b16 %v70
    %v281 = vunpack.c.l.b16 %v71
    %v282 = vunpack.c.l.b16 %v72
    %v283 = vunpack.c.l.b16 %v73
    %v284 = vunpack.c.l.b16 %v74
    %v285 = vunpack.c.l.b16 %v75
    %v286 = vpack.c.b16 %v263, %v262
    %v287 = vpack.c.b16 %v265, %v264
    %v288 = vpack.c.b16 %v267, %v266
    %v289 = vpack.c.b16 %v269, %v268
    %v290 = vpack.c.b16 %v271, %v270
    %v291 = vpack.c.b16 %v273, %v272
    %v292 = vpack.c.b16 %v275, %v274
    %v293 = vpack.c.b16 %v277, %v276
    %v294 = vpack.c.b16 %v279, %v278
    %v295 = vpack.c.b16 %v281, %v280
    %v296 = vpack.c.b16 %v283, %v282
    %v297 = vpack.c.b16 %v285, %v284
    %vm310 = vcmask 523264
    %v312 = vsel %vm310, %v185, 0
    %v315 = vsel %vm310, %v187, 0
    %v318 = vsel %vm310, %v189, 0
    %v321 = vsel %vm310, %v191, 0
    %v324 = vsel %vm310, %v193, 0
    %v327 = vsel %vm310, %v195, 0
    %v330 = vsel %vm310, %v197, 0
    %v333 = vsel %vm310, %v199, 0
    %v336 = vsel %vm310, %v201, 0
    %v339 = vsel %vm310, %v203, 0
    %v342 = vsel %vm310, %v205, 0
    %v345 = vsel %vm310, %v207, 0
    %v348 = vsel %vm310, %v209, 0
    %v351 = vsel %vm310, %v211, 0
    %v354 = vsel %vm310, %v213, 0
    %v357 = vsel %vm310, %v215, 0
    %v360 = vsel %vm310, %v217, 0
    %v363 = vsel %vm310, %v219, 0
    %365 = vmatprep.subr.bf16.mxu0 0
    %366 = vmatpush1.bf16.msra.mxu0 %v286
    %367 = vmatprep.subr.bf16.mxu0 0
    %368 = vmatpush1.bf16.msra.mxu0 %v287
    %369 = vmatprep.subr.bf16.mxu0 0
    %370 = vmatpush1.bf16.msra.mxu0 %v288
    %371 = vmatprep.subr.bf16.mxu0 0
    %372 = vmatpush1.bf16.msra.mxu0 %v289
    %373 = vmatprep.subr.bf16.mxu0 0
    %374 = vmatpush1.bf16.msra.mxu0 %v290
    %375 = vmatprep.subr.bf16.mxu0 0
    %376 = vmatpush1.bf16.msra.mxu0 %v291
    %377 = vmatprep.subr.bf16.mxu0 0
    %378 = vmatpush1.bf16.msra.mxu0 %v292
    %379 = vmatprep.subr.bf16.mxu0 0
    %380 = vmatpush1.bf16.msra.mxu0 %v293
    %381 = vmatprep.subr.bf16.mxu0 0
    %382 = vmatpush1.bf16.msra.mxu0 %v294
    %383 = vmatprep.subr.bf16.mxu0 0
    %384 = vmatpush1.bf16.msra.mxu0 %v295
    %385 = vmatprep.subr.bf16.mxu0 0
    %386 = vmatpush1.bf16.msra.mxu0 %v296
    %387 = vmatprep.subr.bf16.mxu0 0
    %388 = vmatpush1.bf16.msra.mxu0 %v297
    %389 = vmatprep.subr.bf16.mxu0 0
    %390 = vmatpush1.bf16.msra.mxu0 0
    %391 = vmatprep.subr.bf16.mxu0 0
    %392 = vmatpush1.bf16.msra.mxu0 0
    %393 = vmatprep.subr.bf16.mxu0 0
    %394 = vmatpush1.bf16.msra.mxu0 0
    %395 = vmatprep.subr.bf16.mxu0 0
    %396 = vmatpush1.bf16.msra.mxu0 0
    %397 = vmatprep.mubr.bf16.mxu0 %v312
    %398 = vmatmul.mubr.bf16.gmra.mrb[0].mxu0 %v184
    %v399 = vpop.f32.mrb[0].mxu0
    %v400 = vadd.f32 0.0, %v399
    %v401 = vpop.f32.mrb[0].mxu0
    %v402 = vpop.f32.mrb[0].mxu0
    %v403 = vadd.f32 0.0, %v402
    %v404 = vpop.f32.mrb[0].mxu0
    %405 = vmatprep.mubr.bf16.mxu0 %v315
    %406 = vmatmul.mubr.bf16.gmra.mrb[0].mxu0 %v186
    %v407 = vpop.f32.mrb[0].mxu0
    %v408 = vadd.f32 0.0, %v407
    %v409 = vpop.f32.mrb[0].mxu0
    %v410 = vpop.f32.mrb[0].mxu0
    %v411 = vadd.f32 0.0, %v410
    %v412 = vpop.f32.mrb[0].mxu0
    %413 = vmatprep.mubr.bf16.mxu0 %v318
    %414 = vmatmul.mubr.bf16.gmra.mrb[0].mxu0 %v188
    %v415 = vpop.f32.mrb[0].mxu0
    %v416 = vadd.f32 0.0, %v415
    %v417 = vpop.f32.mrb[0].mxu0
    %v418 = vpop.f32.mrb[0].mxu0
    %v419 = vadd.f32 0.0, %v418
    %v420 = vpop.f32.mrb[0].mxu0
    %421 = vmatprep.mubr.bf16.mxu0 %v321
    %422 = vmatmul.mubr.bf16.gmra.mrb[0].mxu0 %v190
    %v423 = vpop.f32.mrb[0].mxu0
    %v424 = vadd.f32 0.0, %v423
    %v425 = vpop.f32.mrb[0].mxu0
    %v426 = vpop.f32.mrb[0].mxu0
    %v427 = vadd.f32 0.0, %v426
    %v428 = vpop.f32.mrb[0].mxu0
    %429 = vmatprep.mubr.bf16.mxu0 %v324
    %430 = vmatmul.mubr.bf16.gmra.mrb[0].mxu0 %v192
    %v431 = vpop.f32.mrb[0].mxu0
    %v432 = vadd.f32 0.0, %v431
    %v433 = vpop.f32.mrb[0].mxu0
    %v434 = vpop.f32.mrb[0].mxu0
    %v435 = vadd.f32 0.0, %v434
    %v436 = vpop.f32.mrb[0].mxu0
    %437 = vmatprep.mubr.bf16.mxu0 %v327
    %438 = vmatmul.mubr.bf16.gmra.mrb[0].mxu0 %v194
    %v439 = vpop.f32.mrb[0].mxu0
    %v440 = vadd.f32 0.0, %v439
    %v441 = vpop.f32.mrb[0].mxu0
    %v442 = vpop.f32.mrb[0].mxu0
    %v443 = vadd.f32 0.0, %v442
    %v444 = vpop.f32.mrb[0].mxu0
    %445 = vmatprep.mubr.bf16.mxu0 %v330
    %446 = vmatmul.mubr.bf16.gmra.mrb[0].mxu0 %v196
    %v447 = vpop.f32.mrb[0].mxu0
    %v448 = vadd.f32 0.0, %v447
    %v449 = vpop.f32.mrb[0].mxu0
    %v450 = vpop.f32.mrb[0].mxu0
    %v451 = vadd.f32 0.0, %v450
    %v452 = vpop.f32.mrb[0].mxu0
    %453 = vmatprep.mubr.bf16.mxu0 %v333
    %454 = vmatmul.mubr.bf16.gmra.mrb[0].mxu0 %v198
    %v455 = vpop.f32.mrb[0].mxu0
    %v456 = vadd.f32 0.0, %v455
    %v457 = vpop.f32.mrb[0].mxu0
    %v458 = vpop.f32.mrb[0].mxu0
    %v459 = vadd.f32 0.0, %v458
    %v460 = vpop.f32.mrb[0].mxu0
    %461 = vmatprep.mubr.bf16.mxu0 %v336
    %462 = vmatmul.mubr.bf16.gmra.mrb[0].mxu0 %v200
    %v463 = vpop.f32.mrb[0].mxu0
    %v464 = vadd.f32 0.0, %v463
    %v465 = vpop.f32.mrb[0].mxu0
    %v466 = vpop.f32.mrb[0].mxu0
    %v467 = vadd.f32 0.0, %v466
    %v468 = vpop.f32.mrb[0].mxu0
    %469 = vmatprep.mubr.bf16.mxu0 %v339
    %470 = vmatmul.mubr.bf16.gmra.mrb[0].mxu0 %v202
    %v471 = vpop.f32.mrb[0].mxu0
    %v472 = vadd.f32 0.0, %v471
    %v473 = vpop.f32.mrb[0].mxu0
    %v474 = vpop.f32.mrb[0].mxu0
    %v475 = vadd.f32 0.0, %v474
    %v476 = vpop.f32.mrb[0].mxu0
    %477 = vmatprep.mubr.bf16.mxu0 %v342
    %478 = vmatmul.mubr.bf16.gmra.mrb[0].mxu0 %v204
    %v479 = vpop.f32.mrb[0].mxu0
    %v480 = vadd.f32 0.0, %v479
    %v481 = vpop.f32.mrb[0].mxu0
    %v482 = vpop.f32.mrb[0].mxu0
    %v483 = vadd.f32 0.0, %v482
    %v484 = vpop.f32.mrb[0].mxu0
    %485 = vmatprep.mubr.bf16.mxu0 %v345
    %486 = vmatmul.mubr.bf16.gmra.mrb[0].mxu0 %v206
    %v487 = vpop.f32.mrb[0].mxu0
    %v488 = vadd.f32 0.0, %v487
    %v489 = vpop.f32.mrb[0].mxu0
    %v490 = vpop.f32.mrb[0].mxu0
    %v491 = vadd.f32 0.0, %v490
    %v492 = vpop.f32.mrb[0].mxu0
    %493 = vmatprep.mubr.bf16.mxu0 %v348
    %494 = vmatmul.mubr.bf16.gmra.mrb[0].mxu0 %v208
    %v495 = vpop.f32.mrb[0].mxu0
    %v496 = vadd.f32 0.0, %v495
    %v497 = vpop.f32.mrb[0].mxu0
    %v498 = vpop.f32.mrb[0].mxu0
    %v499 = vadd.f32 0.0, %v498
    %v500 = vpop.f32.mrb[0].mxu0
    %501 = vmatprep.mubr.bf16.mxu0 %v351
    %502 = vmatmul.mubr.bf16.gmra.mrb[0].mxu0 %v210
    %v503 = vpop.f32.mrb[0].mxu0
    %v504 = vadd.f32 0.0, %v503
    %v505 = vpop.f32.mrb[0].mxu0
    %v506 = vpop.f32.mrb[0].mxu0
    %v507 = vadd.f32 0.0, %v506
    %v508 = vpop.f32.mrb[0].mxu0
    %509 = vmatprep.mubr.bf16.mxu0 %v354
    %510 = vmatmul.mubr.bf16.gmra.mrb[0].mxu0 %v212
    %v511 = vpop.f32.mrb[0].mxu0
    %v512 = vadd.f32 0.0, %v511
    %v513 = vpop.f32.mrb[0].mxu0
    %v514 = vpop.f32.mrb[0].mxu0
    %v515 = vadd.f32 0.0, %v514
    %v516 = vpop.f32.mrb[0].mxu0
    %517 = vmatprep.mubr.bf16.mxu0 %v357
    %518 = vmatmul.mubr.bf16.gmra.mrb[0].mxu0 %v214
    %v519 = vpop.f32.mrb[0].mxu0
    %v520 = vadd.f32 0.0, %v519
    %v521 = vpop.f32.mrb[0].mxu0
    %v522 = vpop.f32.mrb[0].mxu0
    %v523 = vadd.f32 0.0, %v522
    %v524 = vpop.f32.mrb[0].mxu0
    %525 = vmatprep.mubr.bf16.mxu0 %v360
    %526 = vmatmul.mubr.bf16.gmra.mrb[0].mxu0 %v216
    %v527 = vpop.f32.mrb[0].mxu0
    %v528 = vadd.f32 0.0, %v527
    %v529 = vpop.f32.mrb[0].mxu0
    %v530 = vpop.f32.mrb[0].mxu0
    %v531 = vadd.f32 0.0, %v530
    %v532 = vpop.f32.mrb[0].mxu0
    %533 = vmatprep.mubr.bf16.mxu0 %v363
    %534 = vmatmul.mubr.bf16.gmra.mrb[0].mxu0 %v218
    %v535 = vpop.f32.mrb[0].mxu0
    %v536 = vadd.f32 0.0, %v535
    %v537 = vpop.f32.mrb[0].mxu0
    %v538 = vpop.f32.mrb[0].mxu0
    %v539 = vadd.f32 0.0, %v538
    %v540 = vpop.f32.mrb[0].mxu0
    %541 = vdwg.mxu0
    %578 = vrot.lane.b32.xlu0 %v400, 64
    %v579 = vpop.permute.xlu0 %578
    %580 = vrot.lane.b32.xlu0 %v403, 64
    %v581 = vpop.permute.xlu0 %580
    %582 = vrot.lane.b32.xlu0 %v408, 64
    %v583 = vpop.permute.xlu0 %582
    %584 = vrot.lane.b32.xlu0 %v411, 64
    %v585 = vpop.permute.xlu0 %584
    %586 = vrot.lane.b32.xlu0 %v416, 64
    %v587 = vpop.permute.xlu0 %586
    %588 = vrot.lane.b32.xlu0 %v419, 64
    %v589 = vpop.permute.xlu0 %588
    %590 = vrot.lane.b32.xlu0 %v424, 64
    %v591 = vpop.permute.xlu0 %590
    %592 = vrot.lane.b32.xlu0 %v427, 64
    %v593 = vpop.permute.xlu0 %592
    %594 = vrot.lane.b32.xlu0 %v432, 64
    %v595 = vpop.permute.xlu0 %594
    %596 = vrot.lane.b32.xlu0 %v435, 64
    %v597 = vpop.permute.xlu0 %596
    %598 = vrot.lane.b32.xlu0 %v440, 64
    %v599 = vpop.permute.xlu0 %598
    %600 = vrot.lane.b32.xlu0 %v443, 64
    %v601 = vpop.permute.xlu0 %600
    %602 = vrot.lane.b32.xlu0 %v448, 64
    %v603 = vpop.permute.xlu0 %602
    %604 = vrot.lane.b32.xlu0 %v451, 64
    %v605 = vpop.permute.xlu0 %604
    %606 = vrot.lane.b32.xlu0 %v456, 64
    %v607 = vpop.permute.xlu0 %606
    %608 = vrot.lane.b32.xlu0 %v459, 64
    %v609 = vpop.permute.xlu0 %608
    %610 = vrot.lane.b32.xlu0 %v464, 64
    %v611 = vpop.permute.xlu0 %610
    %612 = vrot.lane.b32.xlu0 %v467, 64
    %v613 = vpop.permute.xlu0 %612
    %614 = vrot.lane.b32.xlu0 %v472, 64
    %v615 = vpop.permute.xlu0 %614
    %616 = vrot.lane.b32.xlu0 %v475, 64
    %v617 = vpop.permute.xlu0 %616
    %618 = vrot.lane.b32.xlu0 %v480, 64
    %v619 = vpop.permute.xlu0 %618
    %620 = vrot.lane.b32.xlu0 %v483, 64
    %v621 = vpop.permute.xlu0 %620
    %622 = vrot.lane.b32.xlu0 %v488, 64
    %v623 = vpop.permute.xlu0 %622
    %624 = vrot.lane.b32.xlu0 %v491, 64
    %v625 = vpop.permute.xlu0 %624
    %626 = vrot.lane.b32.xlu0 %v496, 64
    %v627 = vpop.permute.xlu0 %626
    %628 = vrot.lane.b32.xlu0 %v499, 64
    %v629 = vpop.permute.xlu0 %628
    %630 = vrot.lane.b32.xlu0 %v504, 64
    %v631 = vpop.permute.xlu0 %630
    %632 = vrot.lane.b32.xlu0 %v507, 64
    %v633 = vpop.permute.xlu0 %632
    %634 = vrot.lane.b32.xlu0 %v512, 64
    %v635 = vpop.permute.xlu0 %634
    %636 = vrot.lane.b32.xlu0 %v515, 64
    %v637 = vpop.permute.xlu0 %636
    %638 = vrot.lane.b32.xlu0 %v520, 64
    %v639 = vpop.permute.xlu0 %638
    %640 = vrot.lane.b32.xlu0 %v523, 64
    %v641 = vpop.permute.xlu0 %640
    %642 = vrot.lane.b32.xlu0 %v528, 64
    %v643 = vpop.permute.xlu0 %642
    %644 = vrot.lane.b32.xlu0 %v531, 64
    %v645 = vpop.permute.xlu0 %644
    %646 = vrot.lane.b32.xlu0 %v536, 64
    %v647 = vpop.permute.xlu0 %646
    %648 = vrot.lane.b32.xlu0 %v539, 64
    %v649 = vpop.permute.xlu0 %648
    %v686 = vmax.f32 %v400, %v579
    %v687 = vmax.f32 %v403, %v581
    %v688 = vmax.f32 %v408, %v583
    %v689 = vmax.f32 %v411, %v585
    %v690 = vmax.f32 %v416, %v587
    %v691 = vmax.f32 %v419, %v589
    %v692 = vmax.f32 %v424, %v591
    %v693 = vmax.f32 %v427, %v593
    %v694 = vmax.f32 %v432, %v595
    %v695 = vmax.f32 %v435, %v597
    %v696 = vmax.f32 %v440, %v599
    %v697 = vmax.f32 %v443, %v601
    %v698 = vmax.f32 %v448, %v603
    %v699 = vmax.f32 %v451, %v605
    %v700 = vmax.f32 %v456, %v607
    %v701 = vmax.f32 %v459, %v609
    %v702 = vmax.f32 %v464, %v611
    %v703 = vmax.f32 %v467, %v613
    %v704 = vmax.f32 %v472, %v615
    %v705 = vmax.f32 %v475, %v617
    %v706 = vmax.f32 %v480, %v619
    %v707 = vmax.f32 %v483, %v621
    %v708 = vmax.f32 %v488, %v623
    %v709 = vmax.f32 %v491, %v625
    %v710 = vmax.f32 %v496, %v627
    %v711 = vmax.f32 %v499, %v629
    %v712 = vmax.f32 %v504, %v631
    %v713 = vmax.f32 %v507, %v633
    %v714 = vmax.f32 %v512, %v635
    %v715 = vmax.f32 %v515, %v637
    %v716 = vmax.f32 %v520, %v639
    %v717 = vmax.f32 %v523, %v641
    %v718 = vmax.f32 %v528, %v643
    %v719 = vmax.f32 %v531, %v645
    %v720 = vmax.f32 %v536, %v647
    %v721 = vmax.f32 %v539, %v649
    %v722 = vld [vmem:[%s2] sm:$0x1]
    %v723 = vlaneseq
    %v724 = vshrl.u32 %v723, 7
    %v725 = vsub.s32 0, %v724
    %v726 = vrot.slane %v722, %v725
    %v727 = vadd.f32 %v686, %v726
    %v728 = vadd.f32 %v687, %v726
    %v729 = vadd.f32 %v688, %v726
    %v730 = vadd.f32 %v689, %v726
    %v731 = vadd.f32 %v690, %v726
    %v732 = vadd.f32 %v691, %v726
    %v733 = vadd.f32 %v692, %v726
    %v734 = vadd.f32 %v693, %v726
    %v735 = vadd.f32 %v694, %v726
    %v736 = vadd.f32 %v695, %v726
    %v737 = vadd.f32 %v696, %v726
    %v738 = vadd.f32 %v697, %v726
    %v739 = vadd.f32 %v698, %v726
    %v740 = vadd.f32 %v699, %v726
    %v741 = vadd.f32 %v700, %v726
    %v742 = vadd.f32 %v701, %v726
    %v743 = vadd.f32 %v702, %v726
    %v744 = vadd.f32 %v703, %v726
    %v745 = vadd.f32 %v704, %v726
    %v746 = vadd.f32 %v705, %v726
    %v747 = vadd.f32 %v706, %v726
    %v748 = vadd.f32 %v707, %v726
    %v749 = vadd.f32 %v708, %v726
    %v750 = vadd.f32 %v709, %v726
    %v751 = vadd.f32 %v710, %v726
    %v752 = vadd.f32 %v711, %v726
    %v753 = vadd.f32 %v712, %v726
    %v754 = vadd.f32 %v713, %v726
    %v755 = vadd.f32 %v714, %v726
    %v756 = vadd.f32 %v715, %v726
    %v757 = vadd.f32 %v716, %v726
    %v758 = vadd.f32 %v717, %v726
    %v759 = vadd.f32 %v718, %v726
    %v760 = vadd.f32 %v719, %v726
    %v761 = vadd.f32 %v720, %v726
    %v762 = vadd.f32 %v721, %v726
    %v763 = vmax.f32 %v727, 0.0
    %v764 = vmax.f32 %v728, 0.0
    %v765 = vmax.f32 %v729, 0.0
    %v766 = vmax.f32 %v730, 0.0
    %v767 = vmax.f32 %v731, 0.0
    %v768 = vmax.f32 %v732, 0.0
    %v769 = vmax.f32 %v733, 0.0
    %v770 = vmax.f32 %v734, 0.0
    %v771 = vmax.f32 %v735, 0.0
    %v772 = vmax.f32 %v736, 0.0
    %v773 = vmax.f32 %v737, 0.0
    %v774 = vmax.f32 %v738, 0.0
    %v775 = vmax.f32 %v739, 0.0
    %v776 = vmax.f32 %v740, 0.0
    %v777 = vmax.f32 %v741, 0.0
    %v778 = vmax.f32 %v742, 0.0
    %v779 = vmax.f32 %v743, 0.0
    %v780 = vmax.f32 %v744, 0.0
    %v781 = vmax.f32 %v745, 0.0
    %v782 = vmax.f32 %v746, 0.0
    %v783 = vmax.f32 %v747, 0.0
    %v784 = vmax.f32 %v748, 0.0
    %v785 = vmax.f32 %v749, 0.0
    %v786 = vmax.f32 %v750, 0.0
    %v787 = vmax.f32 %v751, 0.0
    %v788 = vmax.f32 %v752, 0.0
    %v789 = vmax.f32 %v753, 0.0
    %v790 = vmax.f32 %v754, 0.0
    %v791 = vmax.f32 %v755, 0.0
    %v792 = vmax.f32 %v756, 0.0
    %v793 = vmax.f32 %v757, 0.0
    %v794 = vmax.f32 %v758, 0.0
    %v795 = vmax.f32 %v759, 0.0
    %v796 = vmax.f32 %v760, 0.0
    %v797 = vmax.f32 %v761, 0.0
    %v798 = vmax.f32 %v762, 0.0
    %v799 = vpack.c.bf16 %v764, %v763
    %v800 = vpack.c.bf16 %v766, %v765
    %v801 = vpack.c.bf16 %v768, %v767
    %v802 = vpack.c.bf16 %v770, %v769
    %v803 = vpack.c.bf16 %v772, %v771
    %v804 = vpack.c.bf16 %v774, %v773
    %v805 = vpack.c.bf16 %v776, %v775
    %v806 = vpack.c.bf16 %v778, %v777
    %v807 = vpack.c.bf16 %v780, %v779
    %v808 = vpack.c.bf16 %v782, %v781
    %v809 = vpack.c.bf16 %v784, %v783
    %v810 = vpack.c.bf16 %v786, %v785
    %v811 = vpack.c.bf16 %v788, %v787
    %v812 = vpack.c.bf16 %v790, %v789
    %v813 = vpack.c.bf16 %v792, %v791
    %v814 = vpack.c.bf16 %v794, %v793
    %v815 = vpack.c.bf16 %v796, %v795
    %v816 = vpack.c.bf16 %v798, %v797
    %817 = vst.msk [vmem:[#allocation2] sm:$0xff] %vm310, %v799
    %818 = vst.msk [vmem:[#allocation2 + $0x8] sm:$0xff] %vm310, %v800
    %819 = vst.msk [vmem:[#allocation2 + $0x10] sm:$0xff] %vm310, %v801
    %820 = vst.msk [vmem:[#allocation2 + $0x18] sm:$0xff] %vm310, %v802
    %821 = vst.msk [vmem:[#allocation2 + $0x20] sm:$0xff] %vm310, %v803
    %822 = vst.msk [vmem:[#allocation2 + $0x28] sm:$0xff] %vm310, %v804
    %823 = vst.msk [vmem:[#allocation2 + $0x30] sm:$0xff] %vm310, %v805
    %824 = vst.msk [vmem:[#allocation2 + $0x38] sm:$0xff] %vm310, %v806
    %825 = vst.msk [vmem:[#allocation2 + $0x40] sm:$0xff] %vm310, %v807
    %826 = vst.msk [vmem:[#allocation2 + $0x48] sm:$0xff] %vm310, %v808
    %827 = vst.msk [vmem:[#allocation2 + $0x50] sm:$0xff] %vm310, %v809
    %828 = vst.msk [vmem:[#allocation2 + $0x58] sm:$0xff] %vm310, %v810
    %829 = vst.msk [vmem:[#allocation2 + $0x60] sm:$0xff] %vm310, %v811
    %830 = vst.msk [vmem:[#allocation2 + $0x68] sm:$0xff] %vm310, %v812
    %831 = vst.msk [vmem:[#allocation2 + $0x70] sm:$0xff] %vm310, %v813
    %832 = vst.msk [vmem:[#allocation2 + $0x78] sm:$0xff] %vm310, %v814
    %833 = vst.msk [vmem:[#allocation2 + $0x80] sm:$0xff] %vm310, %v815
    %834 = vst.msk [vmem:[#allocation2 + $0x88] sm:$0xff] %vm310, %v816
    %v835 = vld [vmem:[#allocation2] sm:$0xff]
    %v836 = vld [vmem:[#allocation2 + $0x8] sm:$0xff]
    %v837 = vld [vmem:[#allocation2 + $0x10] sm:$0xff]
    %v838 = vld [vmem:[%s1 + $0x60] sm:$0xf]
    %v839 = vld [vmem:[%s1 + $0x64] sm:$0xf]
    %v840 = vld [vmem:[%s1 + $0x68] sm:$0xf]
    %v841 = vld [vmem:[%s1 + $0x6c] sm:$0xf]
    %v842 = vld [vmem:[%s1 + $0x70] sm:$0xf]
    %v843 = vld [vmem:[%s1 + $0x74] sm:$0xf]
    %v844 = vld [vmem:[%s1 + $0x78] sm:$0xf]
    %v845 = vld [vmem:[%s1 + $0x7c] sm:$0xf]
    %v846 = vld [vmem:[#allocation2 + $0x18] sm:$0xff]
    %v847 = vld [vmem:[#allocation2 + $0x20] sm:$0xff]
    %v848 = vld [vmem:[#allocation2 + $0x28] sm:$0xff]
    %v849 = vld [vmem:[%s1 + $0x80] sm:$0xf]
    %v850 = vld [vmem:[%s1 + $0x84] sm:$0xf]
    %v851 = vld [vmem:[%s1 + $0x88] sm:$0xf]
    %v852 = vld [vmem:[%s1 + $0x8c] sm:$0xf]
    %v853 = vld [vmem:[%s1 + $0x90] sm:$0xf]
    %v854 = vld [vmem:[%s1 + $0x94] sm:$0xf]
    %v855 = vld [vmem:[%s1 + $0x98] sm:$0xf]
    %v856 = vld [vmem:[%s1 + $0x9c] sm:$0xf]
    %v865 = vunpack.c.l.b16 %v849
    %v866 = vunpack.c.l.b16 %v850
    %v867 = vunpack.c.l.b16 %v851
    %v868 = vunpack.c.l.b16 %v852
    %v869 = vunpack.c.l.b16 %v853
    %v870 = vunpack.c.l.b16 %v854
    %v871 = vunpack.c.l.b16 %v855
    %v872 = vunpack.c.l.b16 %v856
    %v873 = vpack.c.b16 %v866, %v865
    %v874 = vpack.c.b16 %v868, %v867
    %v875 = vpack.c.b16 %v870, %v869
    %v876 = vpack.c.b16 %v872, %v871
    %v882 = vsel %vm310, %v846, 0
    %v885 = vsel %vm310, %v847, 0
    %v888 = vsel %vm310, %v848, 0
    %890 = vmatprep.subr.bf16.mxu0 0
    %891 = vmatpush1.bf16.msra.mxu0 %v873
    %892 = vmatprep.subr.bf16.mxu0 0
    %893 = vmatpush1.bf16.msra.mxu0 %v874
    %894 = vmatprep.subr.bf16.mxu0 0
    %895 = vmatpush1.bf16.msra.mxu0 %v875
    %896 = vmatprep.subr.bf16.mxu0 0
    %897 = vmatpush1.bf16.msra.mxu0 %v876
    %898 = vmatprep.subr.bf16.mxu0 0
    %899 = vmatpush1.bf16.msra.mxu0 0
    %900 = vmatprep.subr.bf16.mxu0 0
    %901 = vmatpush1.bf16.msra.mxu0 0
    %902 = vmatprep.subr.bf16.mxu0 0
    %903 = vmatpush1.bf16.msra.mxu0 0
    %904 = vmatprep.subr.bf16.mxu0 0
    %905 = vmatpush1.bf16.msra.mxu0 0
    %906 = vmatprep.subr.bf16.mxu0 0
    %907 = vmatpush1.bf16.msra.mxu0 0
    %908 = vmatprep.subr.bf16.mxu0 0
    %909 = vmatpush1.bf16.msra.mxu0 0
    %910 = vmatprep.subr.bf16.mxu0 0
    %911 = vmatpush1.bf16.msra.mxu0 0
    %912 = vmatprep.subr.bf16.mxu0 0
    %913 = vmatpush1.bf16.msra.mxu0 0
    %914 = vmatprep.subr.bf16.mxu0 0
    %915 = vmatpush1.bf16.msra.mxu0 0
    %916 = vmatprep.subr.bf16.mxu0 0
    %917 = vmatpush1.bf16.msra.mxu0 0
    %918 = vmatprep.subr.bf16.mxu0 0
    %919 = vmatpush1.bf16.msra.mxu0 0
    %920 = vmatprep.subr.bf16.mxu0 0
    %921 = vmatpush1.bf16.msra.mxu0 0
    %922 = vmatprep.mubr.bf16.mxu0 0
    %923 = vmatmul.mubr.bf16.gmra.mrb[0].mxu0 %v882
    %v924 = vpop.f32.mrb[0].mxu0
    %v925 = vadd.f32 0.0, %v924
    %v926 = vpop.f32.mrb[0].mxu0
    %v927 = vpop.f32.mrb[0].mxu0
    %v928 = vadd.f32 0.0, %v927
    %v929 = vpop.f32.mrb[0].mxu0
    %930 = vmatprep.mubr.bf16.mxu0 0
    %931 = vmatmul.mubr.bf16.gmra.mrb[0].mxu0 %v885
    %v932 = vpop.f32.mrb[0].mxu0
    %v933 = vadd.f32 0.0, %v932
    %v934 = vpop.f32.mrb[0].mxu0
    %v935 = vpop.f32.mrb[0].mxu0
    %v936 = vadd.f32 0.0, %v935
    %v937 = vpop.f32.mrb[0].mxu0
    %938 = vmatprep.mubr.bf16.mxu0 0
    %939 = vmatmul.mubr.bf16.gmra.mrb[0].mxu0 %v888
    %v940 = vpop.f32.mrb[0].mxu0
    %v941 = vadd.f32 0.0, %v940
    %v942 = vpop.f32.mrb[0].mxu0
    %v943 = vpop.f32.mrb[0].mxu0
    %v944 = vadd.f32 0.0, %v943
    %v945 = vpop.f32.mrb[0].mxu0
    %946 = vdwg.mxu0
    %v955 = vunpack.c.l.b16 %v838
    %v956 = vunpack.c.l.b16 %v839
    %v957 = vunpack.c.l.b16 %v840
    %v958 = vunpack.c.l.b16 %v841
    %v959 = vunpack.c.l.b16 %v842
    %v960 = vunpack.c.l.b16 %v843
    %v961 = vunpack.c.l.b16 %v844
    %v962 = vunpack.c.l.b16 %v845
    %v963 = vpack.c.b16 %v956, %v955
    %v964 = vpack.c.b16 %v958, %v957
    %v965 = vpack.c.b16 %v960, %v959
    %v966 = vpack.c.b16 %v962, %v961
    %v972 = vsel %vm310, %v835, 0
    %v975 = vsel %vm310, %v836, 0
    %v978 = vsel %vm310, %v837, 0
    %980 = vmatprep.subr.bf16.mxu0 0
    %981 = vmatpush1.bf16.msra.mxu0 %v963
    %982 = vmatprep.subr.bf16.mxu0 0
    %983 = vmatpush1.bf16.msra.mxu0 %v964
    %984 = vmatprep.subr.bf16.mxu0 0
    %985 = vmatpush1.bf16.msra.mxu0 %v965
    %986 = vmatprep.subr.bf16.mxu0 0
    %987 = vmatpush1.bf16.msra.mxu0 %v966
    %988 = vmatprep.subr.bf16.mxu0 0
    %989 = vmatpush1.bf16.msra.mxu0 0
    %990 = vmatprep.subr.bf16.mxu0 0
    %991 = vmatpush1.bf16.msra.mxu0 0
    %992 = vmatprep.subr.bf16.mxu0 0
    %993 = vmatpush1.bf16.msra.mxu0 0
    %994 = vmatprep.subr.bf16.mxu0 0
    %995 = vmatpush1.bf16.msra.mxu0 0
    %996 = vmatprep.subr.bf16.mxu0 0
    %997 = vmatpush1.bf16.msra.mxu0 0
    %998 = vmatprep.subr.bf16.mxu0 0
    %999 = vmatpush1.bf16.msra.mxu0 0
    %1000 = vmatprep.subr.bf16.mxu0 0
    %1001 = vmatpush1.bf16.msra.mxu0 0
    %1002 = vmatprep.subr.bf16.mxu0 0
    %1003 = vmatpush1.bf16.msra.mxu0 0
    %1004 = vmatprep.subr.bf16.mxu0 0
    %1005 = vmatpush1.bf16.msra.mxu0 0
    %1006 = vmatprep.subr.bf16.mxu0 0
    %1007 = vmatpush1.bf16.msra.mxu0 0
    %1008 = vmatprep.subr.bf16.mxu0 0
    %1009 = vmatpush1.bf16.msra.mxu0 0
    %1010 = vmatprep.subr.bf16.mxu0 0
    %1011 = vmatpush1.bf16.msra.mxu0 0
    %1012 = vmatprep.mubr.bf16.mxu0 0
    %1013 = vmatmul.mubr.bf16.gmra.mrb[0].mxu0 %v972
    %v1014 = vpop.f32.mrb[0].mxu0
    %v1015 = vadd.f32 %v925, %v1014
    %v1016 = vpop.f32.mrb[0].mxu0
    %v1017 = vpop.f32.mrb[0].mxu0
    %v1018 = vadd.f32 %v928, %v1017
    %v1019 = vpop.f32.mrb[0].mxu0
    %1020 = vmatprep.mubr.bf16.mxu0 0
    %1021 = vmatmul.mubr.bf16.gmra.mrb[0].mxu0 %v975
    %v1022 = vpop.f32.mrb[0].mxu0
    %v1023 = vadd.f32 %v933, %v1022
    %v1024 = vpop.f32.mrb[0].mxu0
    %v1025 = vpop.f32.mrb[0].mxu0
    %v1026 = vadd.f32 %v936, %v1025
    %v1027 = vpop.f32.mrb[0].mxu0
    %1028 = vmatprep.mubr.bf16.mxu0 0
    %1029 = vmatmul.mubr.bf16.gmra.mrb[0].mxu0 %v978
    %v1030 = vpop.f32.mrb[0].mxu0
    %v1031 = vadd.f32 %v941, %v1030
    %v1032 = vpop.f32.mrb[0].mxu0
    %v1033 = vpop.f32.mrb[0].mxu0
    %v1034 = vadd.f32 %v944, %v1033
    %v1035 = vpop.f32.mrb[0].mxu0
    %1036 = vdwg.mxu0
    %v1037 = vld [vmem:[#allocation2 + $0x30] sm:$0xff]
    %v1038 = vld [vmem:[#allocation2 + $0x38] sm:$0xff]
    %v1039 = vld [vmem:[#allocation2 + $0x40] sm:$0xff]
    %v1040 = vld [vmem:[%s1 + $0xa0] sm:$0xf]
    %v1041 = vld [vmem:[%s1 + $0xa4] sm:$0xf]
    %v1042 = vld [vmem:[%s1 + $0xa8] sm:$0xf]
    %v1043 = vld [vmem:[%s1 + $0xac] sm:$0xf]
    %v1044 = vld [vmem:[%s1 + $0xb0] sm:$0xf]
    %v1045 = vld [vmem:[%s1 + $0xb4] sm:$0xf]
    %v1046 = vld [vmem:[%s1 + $0xb8] sm:$0xf]
    %v1047 = vld [vmem:[%s1 + $0xbc] sm:$0xf]
    %v1056 = vunpack.c.l.b16 %v1040
    %v1057 = vunpack.c.l.b16 %v1041
    %v1058 = vunpack.c.l.b16 %v1042
    %v1059 = vunpack.c.l.b16 %v1043
    %v1060 = vunpack.c.l.b16 %v1044
    %v1061 = vunpack.c.l.b16 %v1045
    %v1062 = vunpack.c.l.b16 %v1046
    %v1063 = vunpack.c.l.b16 %v1047
    %v1064 = vpack.c.b16 %v1057, %v1056
    %v1065 = vpack.c.b16 %v1059, %v1058
    %v1066 = vpack.c.b16 %v1061, %v1060
    %v1067 = vpack.c.b16 %v1063, %v1062
    %v1073 = vsel %vm310, %v1037, 0
    %v1076 = vsel %vm310, %v1038, 0
    %v1079 = vsel %vm310, %v1039, 0
    %1081 = vmatprep.subr.bf16.mxu0 0
    %1082 = vmatpush1.bf16.msra.mxu0 %v1064
    %1083 = vmatprep.subr.bf16.mxu0 0
    %1084 = vmatpush1.bf16.msra.mxu0 %v1065
    %1085 = vmatprep.subr.bf16.mxu0 0
    %1086 = vmatpush1.bf16.msra.mxu0 %v1066
    %1087 = vmatprep.subr.bf16.mxu0 0
    %1088 = vmatpush1.bf16.msra.mxu0 %v1067
    %1089 = vmatprep.subr.bf16.mxu0 0
    %1090 = vmatpush1.bf16.msra.mxu0 0
    %1091 = vmatprep.subr.bf16.mxu0 0
    %1092 = vmatpush1.bf16.msra.mxu0 0
    %1093 = vmatprep.subr.bf16.mxu0 0
    %1094 = vmatpush1.bf16.msra.mxu0 0
    %1095 = vmatprep.subr.bf16.mxu0 0
    %1096 = vmatpush1.bf16.msra.mxu0 0
    %1097 = vmatprep.subr.bf16.mxu0 0
    %1098 = vmatpush1.bf16.msra.mxu0 0
    %1099 = vmatprep.subr.bf16.mxu0 0
    %1100 = vmatpush1.bf16.msra.mxu0 0
    %1101 = vmatprep.subr.bf16.mxu0 0
    %1102 = vmatpush1.bf16.msra.mxu0 0
    %1103 = vmatprep.subr.bf16.mxu0 0
    %1104 = vmatpush1.bf16.msra.mxu0 0
    %1105 = vmatprep.subr.bf16.mxu0 0
    %1106 = vmatpush1.bf16.msra.mxu0 0
    %1107 = vmatprep.subr.bf16.mxu0 0
    %1108 = vmatpush1.bf16.msra.mxu0 0
    %1109 = vmatprep.subr.bf16.mxu0 0
    %1110 = vmatpush1.bf16.msra.mxu0 0
    %1111 = vmatprep.subr.bf16.mxu0 0
    %1112 = vmatpush1.bf16.msra.mxu0 0
    %1113 = vmatprep.mubr.bf16.mxu0 0
    %1114 = vmatmul.mubr.bf16.gmra.mrb[0].mxu0 %v1073
    %v1115 = vpop.f32.mrb[0].mxu0
    %v1116 = vadd.f32 0.0, %v1115
    %v1117 = vpop.f32.mrb[0].mxu0
    %v1118 = vpop.f32.mrb[0].mxu0
    %v1119 = vadd.f32 0.0, %v1118
    %v1120 = vpop.f32.mrb[0].mxu0
    %1121 = vmatprep.mubr.bf16.mxu0 0
    %1122 = vmatmul.mubr.bf16.gmra.mrb[0].mxu0 %v1076
    %v1123 = vpop.f32.mrb[0].mxu0
    %v1124 = vadd.f32 0.0, %v1123
    %v1125 = vpop.f32.mrb[0].mxu0
    %v1126 = vpop.f32.mrb[0].mxu0
    %v1127 = vadd.f32 0.0, %v1126
    %v1128 = vpop.f32.mrb[0].mxu0
    %1129 = vmatprep.mubr.bf16.mxu0 0
    %1130 = vmatmul.mubr.bf16.gmra.mrb[0].mxu0 %v1079
    %v1131 = vpop.f32.mrb[0].mxu0
    %v1132 = vadd.f32 0.0, %v1131
    %v1133 = vpop.f32.mrb[0].mxu0
    %v1134 = vpop.f32.mrb[0].mxu0
    %v1135 = vadd.f32 0.0, %v1134
    %v1136 = vpop.f32.mrb[0].mxu0
    %1137 = vdwg.mxu0
    %v1138 = vadd.f32 %v1015, %v1116
    %v1139 = vadd.f32 %v1018, %v1119
    %v1140 = vadd.f32 %v1023, %v1124
    %v1141 = vadd.f32 %v1026, %v1127
    %v1142 = vadd.f32 %v1031, %v1132
    %v1143 = vadd.f32 %v1034, %v1135
    %v1144 = vld [vmem:[#allocation2 + $0x48] sm:$0xff]
    %v1145 = vld [vmem:[#allocation2 + $0x50] sm:$0xff]
    %v1146 = vld [vmem:[#allocation2 + $0x58] sm:$0xff]
    %v1147 = vld [vmem:[#allocation2 + $0x60] sm:$0xff]
    %v1148 = vld [vmem:[#allocation2 + $0x68] sm:$0xff]
    %v1149 = vld [vmem:[#allocation2 + $0x70] sm:$0xff]
    %v1151 = vsel %vm310, %v1147, 0
    %v1154 = vsel %vm310, %v1148, 0
    %v1157 = vsel %vm310, %v1149, 0
    %1159 = vmatprep.subr.bf16.mxu0 0
    %1160 = vmatpush1.bf16.msra.mxu0 %v873
    %1161 = vmatprep.subr.bf16.mxu0 0
    %1162 = vmatpush1.bf16.msra.mxu0 %v874
    %1163 = vmatprep.subr.bf16.mxu0 0
    %1164 = vmatpush1.bf16.msra.mxu0 %v875
    %1165 = vmatprep.subr.bf16.mxu0 0
    %1166 = vmatpush1.bf16.msra.mxu0 %v876
    %1167 = vmatprep.subr.bf16.mxu0 0
    %1168 = vmatpush1.bf16.msra.mxu0 0
    %1169 = vmatprep.subr.bf16.mxu0 0
    %1170 = vmatpush1.bf16.msra.mxu0 0
    %1171 = vmatprep.subr.bf16.mxu0 0
    %1172 = vmatpush1.bf16.msra.mxu0 0
    %1173 = vmatprep.subr.bf16.mxu0 0
    %1174 = vmatpush1.bf16.msra.mxu0 0
    %1175 = vmatprep.subr.bf16.mxu0 0
    %1176 = vmatpush1.bf16.msra.mxu0 0
    %1177 = vmatprep.subr.bf16.mxu0 0
    %1178 = vmatpush1.bf16.msra.mxu0 0
    %1179 = vmatprep.subr.bf16.mxu0 0
    %1180 = vmatpush1.bf16.msra.mxu0 0
    %1181 = vmatprep.subr.bf16.mxu0 0
    %1182 = vmatpush1.bf16.msra.mxu0 0
    %1183 = vmatprep.subr.bf16.mxu0 0
    %1184 = vmatpush1.bf16.msra.mxu0 0
    %1185 = vmatprep.subr.bf16.mxu0 0
    %1186 = vmatpush1.bf16.msra.mxu0 0
    %1187 = vmatprep.subr.bf16.mxu0 0
    %1188 = vmatpush1.bf16.msra.mxu0 0
    %1189 = vmatprep.subr.bf16.mxu0 0
    %1190 = vmatpush1.bf16.msra.mxu0 0
    %1191 = vmatprep.mubr.bf16.mxu0 0
    %1192 = vmatmul.mubr.bf16.gmra.mrb[0].mxu0 %v1151
    %v1193 = vpop.f32.mrb[0].mxu0
    %v1194 = vadd.f32 0.0, %v1193
    %v1195 = vpop.f32.mrb[0].mxu0
    %v1196 = vpop.f32.mrb[0].mxu0
    %v1197 = vadd.f32 0.0, %v1196
    %v1198 = vpop.f32.mrb[0].mxu0
    %1199 = vmatprep.mubr.bf16.mxu0 0
    %1200 = vmatmul.mubr.bf16.gmra.mrb[0].mxu0 %v1154
    %v1201 = vpop.f32.mrb[0].mxu0
    %v1202 = vadd.f32 0.0, %v1201
    %v1203 = vpop.f32.mrb[0].mxu0
    %v1204 = vpop.f32.mrb[0].mxu0
    %v1205 = vadd.f32 0.0, %v1204
    %v1206 = vpop.f32.mrb[0].mxu0
    %1207 = vmatprep.mubr.bf16.mxu0 0
    %1208 = vmatmul.mubr.bf16.gmra.mrb[0].mxu0 %v1157
    %v1209 = vpop.f32.mrb[0].mxu0
    %v1210 = vadd.f32 0.0, %v1209
    %v1211 = vpop.f32.mrb[0].mxu0
    %v1212 = vpop.f32.mrb[0].mxu0
    %v1213 = vadd.f32 0.0, %v1212
    %v1214 = vpop.f32.mrb[0].mxu0
    %1215 = vdwg.mxu0
    %v1217 = vsel %vm310, %v1144, 0
    %v1220 = vsel %vm310, %v1145, 0
    %v1223 = vsel %vm310, %v1146, 0
    %1225 = vmatprep.subr.bf16.mxu0 0
    %1226 = vmatpush1.bf16.msra.mxu0 %v963
    %1227 = vmatprep.subr.bf16.mxu0 0
    %1228 = vmatpush1.bf16.msra.mxu0 %v964
    %1229 = vmatprep.subr.bf16.mxu0 0
    %1230 = vmatpush1.bf16.msra.mxu0 %v965
    %1231 = vmatprep.subr.bf16.mxu0 0
    %1232 = vmatpush1.bf16.msra.mxu0 %v966
    %1233 = vmatprep.subr.bf16.mxu0 0
    %1234 = vmatpush1.bf16.msra.mxu0 0
    %1235 = vmatprep.subr.bf16.mxu0 0
    %1236 = vmatpush1.bf16.msra.mxu0 0
    %1237 = vmatprep.subr.bf16.mxu0 0
    %1238 = vmatpush1.bf16.msra.mxu0 0
    %1239 = vmatprep.subr.bf16.mxu0 0
    %1240 = vmatpush1.bf16.msra.mxu0 0
    %1241 = vmatprep.subr.bf16.mxu0 0
    %1242 = vmatpush1.bf16.msra.mxu0 0
    %1243 = vmatprep.subr.bf16.mxu0 0
    %1244 = vmatpush1.bf16.msra.mxu0 0
    %1245 = vmatprep.subr.bf16.mxu0 0
    %1246 = vmatpush1.bf16.msra.mxu0 0
    %1247 = vmatprep.subr.bf16.mxu0 0
    %1248 = vmatpush1.bf16.msra.mxu0 0
    %1249 = vmatprep.subr.bf16.mxu0 0
    %1250 = vmatpush1.bf16.msra.mxu0 0
    %1251 = vmatprep.subr.bf16.mxu0 0
    %1252 = vmatpush1.bf16.msra.mxu0 0
    %1253 = vmatprep.subr.bf16.mxu0 0
    %1254 = vmatpush1.bf16.msra.mxu0 0
    %1255 = vmatprep.subr.bf16.mxu0 0
    %1256 = vmatpush1.bf16.msra.mxu0 0
    %1257 = vmatprep.mubr.bf16.mxu0 0
    %1258 = vmatmul.mubr.bf16.gmra.mrb[0].mxu0 %v1217
    %v1259 = vpop.f32.mrb[0].mxu0
    %v1260 = vadd.f32 %v1194, %v1259
    %v1261 = vpop.f32.mrb[0].mxu0
    %v1262 = vpop.f32.mrb[0].mxu0
    %v1263 = vadd.f32 %v1197, %v1262
    %v1264 = vpop.f32.mrb[0].mxu0
    %1265 = vmatprep.mubr.bf16.mxu0 0
    %1266 = vmatmul.mubr.bf16.gmra.mrb[0].mxu0 %v1220
    %v1267 = vpop.f32.mrb[0].mxu0
    %v1268 = vadd.f32 %v1202, %v1267
    %v1269 = vpop.f32.mrb[0].mxu0
    %v1270 = vpop.f32.mrb[0].mxu0
    %v1271 = vadd.f32 %v1205, %v1270
    %v1272 = vpop.f32.mrb[0].mxu0
    %1273 = vmatprep.mubr.bf16.mxu0 0
    %1274 = vmatmul.mubr.bf16.gmra.mrb[0].mxu0 %v1223
    %v1275 = vpop.f32.mrb[0].mxu0
    %v1276 = vadd.f32 %v1210, %v1275
    %v1277 = vpop.f32.mrb[0].mxu0
    %v1278 = vpop.f32.mrb[0].mxu0
    %v1279 = vadd.f32 %v1213, %v1278
    %v1280 = vpop.f32.mrb[0].mxu0
    %1281 = vdwg.mxu0
    %v1282 = vld [vmem:[#allocation2 + $0x78] sm:$0xff]
    %v1283 = vld [vmem:[#allocation2 + $0x80] sm:$0xff]
    %v1284 = vld [vmem:[#allocation2 + $0x88] sm:$0xff]
    %v1286 = vsel %vm310, %v1282, 0
    %v1289 = vsel %vm310, %v1283, 0
    %v1292 = vsel %vm310, %v1284, 0
    %1294 = vmatprep.subr.bf16.mxu0 0
    %1295 = vmatpush1.bf16.msra.mxu0 %v1064
    %1296 = vmatprep.subr.bf16.mxu0 0
    %1297 = vmatpush1.bf16.msra.mxu0 %v1065
    %1298 = vmatprep.subr.bf16.mxu0 0
    %1299 = vmatpush1.bf16.msra.mxu0 %v1066
    %1300 = vmatprep.subr.bf16.mxu0 0
    %1301 = vmatpush1.bf16.msra.mxu0 %v1067
    %1302 = vmatprep.subr.bf16.mxu0 0
    %1303 = vmatpush1.bf16.msra.mxu0 0
    %1304 = vmatprep.subr.bf16.mxu0 0
    %1305 = vmatpush1.bf16.msra.mxu0 0
    %1306 = vmatprep.subr.bf16.mxu0 0
    %1307 = vmatpush1.bf16.msra.mxu0 0
    %1308 = vmatprep.subr.bf16.mxu0 0
    %1309 = vmatpush1.bf16.msra.mxu0 0
    %1310 = vmatprep.subr.bf16.mxu0 0
    %1311 = vmatpush1.bf16.msra.mxu0 0
    %1312 = vmatprep.subr.bf16.mxu0 0
    %1313 = vmatpush1.bf16.msra.mxu0 0
    %1314 = vmatprep.subr.bf16.mxu0 0
    %1315 = vmatpush1.bf16.msra.mxu0 0
    %1316 = vmatprep.subr.bf16.mxu0 0
    %1317 = vmatpush1.bf16.msra.mxu0 0
    %1318 = vmatprep.subr.bf16.mxu0 0
    %1319 = vmatpush1.bf16.msra.mxu0 0
    %1320 = vmatprep.subr.bf16.mxu0 0
    %1321 = vmatpush1.bf16.msra.mxu0 0
    %1322 = vmatprep.subr.bf16.mxu0 0
    %1323 = vmatpush1.bf16.msra.mxu0 0
    %1324 = vmatprep.subr.bf16.mxu0 0
    %1325 = vmatpush1.bf16.msra.mxu0 0
    %1326 = vmatprep.mubr.bf16.mxu0 0
    %1327 = vmatmul.mubr.bf16.gmra.mrb[0].mxu0 %v1286
    %v1328 = vpop.f32.mrb[0].mxu0
    %v1329 = vadd.f32 0.0, %v1328
    %v1330 = vpop.f32.mrb[0].mxu0
    %v1331 = vpop.f32.mrb[0].mxu0
    %v1332 = vadd.f32 0.0, %v1331
    %v1333 = vpop.f32.mrb[0].mxu0
    %1334 = vmatprep.mubr.bf16.mxu0 0
    %1335 = vmatmul.mubr.bf16.gmra.mrb[0].mxu0 %v1289
    %v1336 = vpop.f32.mrb[0].mxu0
    %v1337 = vadd.f32 0.0, %v1336
    %v1338 = vpop.f32.mrb[0].mxu0
    %v1339 = vpop.f32.mrb[0].mxu0
    %v1340 = vadd.f32 0.0, %v1339
    %v1341 = vpop.f32.mrb[0].mxu0
    %1342 = vmatprep.mubr.bf16.mxu0 0
    %1343 = vmatmul.mubr.bf16.gmra.mrb[0].mxu0 %v1292
    %v1344 = vpop.f32.mrb[0].mxu0
    %v1345 = vadd.f32 0.0, %v1344
    %v1346 = vpop.f32.mrb[0].mxu0
    %v1347 = vpop.f32.mrb[0].mxu0
    %v1348 = vadd.f32 0.0, %v1347
    %v1349 = vpop.f32.mrb[0].mxu0
    %1350 = vdwg.mxu0
    %v1351 = vadd.f32 %v1260, %v1329
    %v1352 = vadd.f32 %v1263, %v1332
    %v1353 = vadd.f32 %v1268, %v1337
    %v1354 = vadd.f32 %v1271, %v1340
    %v1355 = vadd.f32 %v1276, %v1345
    %v1356 = vadd.f32 %v1279, %v1348
    %v1357 = vmax.f32 %v1138, %v1351
    %v1358 = vmax.f32 %v1139, %v1352
    %v1359 = vmax.f32 %v1140, %v1353
    %v1360 = vmax.f32 %v1141, %v1354
    %v1361 = vmax.f32 %v1142, %v1355
    %v1362 = vmax.f32 %v1143, %v1356
    %v1363 = vld [vmem:[%s2 + $0x1] sm:$0x1]
    %v1364 = vlaneseq
    %v1365 = vshrl.u32 %v1364, 7
    %v1366 = vsub.s32 0, %v1365
    %v1367 = vrot.slane %v1363, %v1366
    %v1368 = vadd.f32 %v1357, %v1367
    %v1369 = vadd.f32 %v1358, %v1367
    %v1370 = vadd.f32 %v1359, %v1367
    %v1371 = vadd.f32 %v1360, %v1367
    %v1372 = vadd.f32 %v1361, %v1367
    %v1373 = vadd.f32 %v1362, %v1367
    %v1374 = vmax.f32 %v1368, 0.0
    %v1375 = vmax.f32 %v1369, 0.0
    %v1376 = vmax.f32 %v1370, 0.0
    %v1377 = vmax.f32 %v1371, 0.0
    %v1378 = vmax.f32 %v1372, 0.0
    %v1379 = vmax.f32 %v1373, 0.0
    %vm1380 = vcmask 261120
    %1381 = vst.msk [vmem:[#allocation3] sm:$0xff] %vm1380, %v1374
    %1382 = vst.msk [vmem:[#allocation3 + $0x8] sm:$0xff] %vm1380, %v1375
    %1383 = vst.msk [vmem:[#allocation3 + $0x10] sm:$0xff] %vm1380, %v1376
    %1384 = vst.msk [vmem:[#allocation3 + $0x18] sm:$0xff] %vm1380, %v1377
    %1385 = vst.msk [vmem:[#allocation3 + $0x20] sm:$0xff] %vm1380, %v1378
    %1386 = vst.msk [vmem:[#allocation3 + $0x28] sm:$0xff] %vm1380, %v1379
    %v1387 = vld [vmem:[#allocation3] sm:$0xff]
    %v1388 = vpack.c.bf16 %v1387, %v1387
    %v1389 = vld [vmem:[%s1 + $0xc0] sm:$0xf]
    %v1390 = vld [vmem:[%s1 + $0xc4] sm:$0xf]
    %v1391 = vld [vmem:[%s1 + $0xc8] sm:$0xf]
    %v1392 = vld [vmem:[%s1 + $0xcc] sm:$0xf]
    %v1393 = vld [vmem:[#allocation3 + $0x8] sm:$0xff]
    %v1394 = vpack.c.bf16 %v1393, %v1393
    %v1395 = vld [vmem:[%s1 + $0xd0] sm:$0xf]
    %v1396 = vld [vmem:[%s1 + $0xd4] sm:$0xf]
    %v1397 = vld [vmem:[%s1 + $0xd8] sm:$0xf]
    %v1398 = vld [vmem:[%s1 + $0xdc] sm:$0xf]
    %v1403 = vunpack.c.l.b16 %v1395
    %v1404 = vunpack.c.l.b16 %v1396
    %v1405 = vunpack.c.l.b16 %v1397
    %v1406 = vunpack.c.l.b16 %v1398
    %v1407 = vpack.c.b16 %v1404, %v1403
    %v1408 = vpack.c.b16 %v1406, %v1405
    %v1412 = vsel %vm1380, %v1394, 0
    %1414 = vmatprep.subr.bf16.mxu0 0
    %1415 = vmatpush1.bf16.msra.mxu0 %v1407
    %1416 = vmatprep.subr.bf16.mxu0 0
    %1417 = vmatpush1.bf16.msra.mxu0 %v1408
    %1418 = vmatprep.subr.bf16.mxu0 0
    %1419 = vmatpush1.bf16.msra.mxu0 0
    %1420 = vmatprep.subr.bf16.mxu0 0
    %1421 = vmatpush1.bf16.msra.mxu0 0
    %1422 = vmatprep.subr.bf16.mxu0 0
    %1423 = vmatpush1.bf16.msra.mxu0 0
    %1424 = vmatprep.subr.bf16.mxu0 0
    %1425 = vmatpush1.bf16.msra.mxu0 0
    %1426 = vmatprep.subr.bf16.mxu0 0
    %1427 = vmatpush1.bf16.msra.mxu0 0
    %1428 = vmatprep.subr.bf16.mxu0 0
    %1429 = vmatpush1.bf16.msra.mxu0 0
    %1430 = vmatprep.subr.bf16.mxu0 0
    %1431 = vmatpush1.bf16.msra.mxu0 0
    %1432 = vmatprep.subr.bf16.mxu0 0
    %1433 = vmatpush1.bf16.msra.mxu0 0
    %1434 = vmatprep.subr.bf16.mxu0 0
    %1435 = vmatpush1.bf16.msra.mxu0 0
    %1436 = vmatprep.subr.bf16.mxu0 0
    %1437 = vmatpush1.bf16.msra.mxu0 0
    %1438 = vmatprep.subr.bf16.mxu0 0
    %1439 = vmatpush1.bf16.msra.mxu0 0
    %1440 = vmatprep.subr.bf16.mxu0 0
    %1441 = vmatpush1.bf16.msra.mxu0 0
    %1442 = vmatprep.subr.bf16.mxu0 0
    %1443 = vmatpush1.bf16.msra.mxu0 0
    %1444 = vmatprep.subr.bf16.mxu0 0
    %1445 = vmatpush1.bf16.msra.mxu0 0
    %1446 = vmatprep.mubr.bf16.mxu0 0
    %1447 = vmatmul.mubr.bf16.gmra.mrb[0].mxu0 %v1412
    %v1448 = vpop.f32.mrb[0].mxu0
    %v1449 = vadd.f32 0.0, %v1448
    %v1450 = vpop.f32.mrb[0].mxu0
    %v1451 = vpop.f32.mrb[0].mxu0
    %v1452 = vpop.f32.mrb[0].mxu0
    %1453 = vdwg.mxu0
    %v1458 = vunpack.c.l.b16 %v1389
    %v1459 = vunpack.c.l.b16 %v1390
    %v1460 = vunpack.c.l.b16 %v1391
    %v1461 = vunpack.c.l.b16 %v1392
    %v1462 = vpack.c.b16 %v1459, %v1458
    %v1463 = vpack.c.b16 %v1461, %v1460
    %v1467 = vsel %vm1380, %v1388, 0
    %1469 = vmatprep.subr.bf16.mxu0 0
    %1470 = vmatpush1.bf16.msra.mxu0 %v1462
    %1471 = vmatprep.subr.bf16.mxu0 0
    %1472 = vmatpush1.bf16.msra.mxu0 %v1463
    %1473 = vmatprep.subr.bf16.mxu0 0
    %1474 = vmatpush1.bf16.msra.mxu0 0
    %1475 = vmatprep.subr.bf16.mxu0 0
    %1476 = vmatpush1.bf16.msra.mxu0 0
    %1477 = vmatprep.subr.bf16.mxu0 0
    %1478 = vmatpush1.bf16.msra.mxu0 0
    %1479 = vmatprep.subr.bf16.mxu0 0
    %1480 = vmatpush1.bf16.msra.mxu0 0
    %1481 = vmatprep.subr.bf16.mxu0 0
    %1482 = vmatpush1.bf16.msra.mxu0 0
    %1483 = vmatprep.subr.bf16.mxu0 0
    %1484 = vmatpush1.bf16.msra.mxu0 0
    %1485 = vmatprep.subr.bf16.mxu0 0
    %1486 = vmatpush1.bf16.msra.mxu0 0
    %1487 = vmatprep.subr.bf16.mxu0 0
    %1488 = vmatpush1.bf16.msra.mxu0 0
    %1489 = vmatprep.subr.bf16.mxu0 0
    %1490 = vmatpush1.bf16.msra.mxu0 0
    %1491 = vmatprep.subr.bf16.mxu0 0
    %1492 = vmatpush1.bf16.msra.mxu0 0
    %1493 = vmatprep.subr.bf16.mxu0 0
    %1494 = vmatpush1.bf16.msra.mxu0 0
    %1495 = vmatprep.subr.bf16.mxu0 0
    %1496 = vmatpush1.bf16.msra.mxu0 0
    %1497 = vmatprep.subr.bf16.mxu0 0
    %1498 = vmatpush1.bf16.msra.mxu0 0
    %1499 = vmatprep.subr.bf16.mxu0 0
    %1500 = vmatpush1.bf16.msra.mxu0 0
    %1501 = vmatprep.mubr.bf16.mxu0 0
    %1502 = vmatmul.mubr.bf16.gmra.mrb[0].mxu0 %v1467
    %v1503 = vpop.f32.mrb[0].mxu0
    %v1504 = vadd.f32 %v1449, %v1503
    %v1505 = vpop.f32.mrb[0].mxu0
    %v1506 = vpop.f32.mrb[0].mxu0
    %v1507 = vpop.f32.mrb[0].mxu0
    %1508 = vdwg.mxu0
    %v1509 = vld [vmem:[#allocation3 + $0x10] sm:$0xff]
    %v1510 = vpack.c.bf16 %v1509, %v1509
    %v1511 = vld [vmem:[%s1 + $0xe0] sm:$0xf]
    %v1512 = vld [vmem:[%s1 + $0xe4] sm:$0xf]
    %v1513 = vld [vmem:[%s1 + $0xe8] sm:$0xf]
    %v1514 = vld [vmem:[%s1 + $0xec] sm:$0xf]
    %v1519 = vunpack.c.l.b16 %v1511
    %v1520 = vunpack.c.l.b16 %v1512
    %v1521 = vunpack.c.l.b16 %v1513
    %v1522 = vunpack.c.l.b16 %v1514
    %v1523 = vpack.c.b16 %v1520, %v1519
    %v1524 = vpack.c.b16 %v1522, %v1521
    %v1528 = vsel %vm1380, %v1510, 0
    %1530 = vmatprep.subr.bf16.mxu0 0
    %1531 = vmatpush1.bf16.msra.mxu0 %v1523
    %1532 = vmatprep.subr.bf16.mxu0 0
    %1533 = vmatpush1.bf16.msra.mxu0 %v1524
    %1534 = vmatprep.subr.bf16.mxu0 0
    %1535 = vmatpush1.bf16.msra.mxu0 0
    %1536 = vmatprep.subr.bf16.mxu0 0
    %1537 = vmatpush1.bf16.msra.mxu0 0
    %1538 = vmatprep.subr.bf16.mxu0 0
    %1539 = vmatpush1.bf16.msra.mxu0 0
    %1540 = vmatprep.subr.bf16.mxu0 0
    %1541 = vmatpush1.bf16.msra.mxu0 0
    %1542 = vmatprep.subr.bf16.mxu0 0
    %1543 = vmatpush1.bf16.msra.mxu0 0
    %1544 = vmatprep.subr.bf16.mxu0 0
    %1545 = vmatpush1.bf16.msra.mxu0 0
    %1546 = vmatprep.subr.bf16.mxu0 0
    %1547 = vmatpush1.bf16.msra.mxu0 0
    %1548 = vmatprep.subr.bf16.mxu0 0
    %1549 = vmatpush1.bf16.msra.mxu0 0
    %1550 = vmatprep.subr.bf16.mxu0 0
    %1551 = vmatpush1.bf16.msra.mxu0 0
    %1552 = vmatprep.subr.bf16.mxu0 0
    %1553 = vmatpush1.bf16.msra.mxu0 0
    %1554 = vmatprep.subr.bf16.mxu0 0
    %1555 = vmatpush1.bf16.msra.mxu0 0
    %1556 = vmatprep.subr.bf16.mxu0 0
    %1557 = vmatpush1.bf16.msra.mxu0 0
    %1558 = vmatprep.subr.bf16.mxu0 0
    %1559 = vmatpush1.bf16.msra.mxu0 0
    %1560 = vmatprep.subr.bf16.mxu0 0
    %1561 = vmatpush1.bf16.msra.mxu0 0
    %1562 = vmatprep.mubr.bf16.mxu0 0
    %1563 = vmatmul.mubr.bf16.gmra.mrb[0].mxu0 %v1528
    %v1564 = vpop.f32.mrb[0].mxu0
    %v1565 = vadd.f32 0.0, %v1564
    %v1566 = vpop.f32.mrb[0].mxu0
    %v1567 = vpop.f32.mrb[0].mxu0
    %v1568 = vpop.f32.mrb[0].mxu0
    %1569 = vdwg.mxu0
    %v1570 = vadd.f32 %v1504, %v1565
    %v1571 = vld [vmem:[#allocation3 + $0x18] sm:$0xff]
    %v1572 = vpack.c.bf16 %v1571, %v1571
    %v1573 = vld [vmem:[#allocation3 + $0x20] sm:$0xff]
    %v1574 = vpack.c.bf16 %v1573, %v1573
    %v1576 = vsel %vm1380, %v1574, 0
    %1578 = vmatprep.subr.bf16.mxu0 0
    %1579 = vmatpush1.bf16.msra.mxu0 %v1407
    %1580 = vmatprep.subr.bf16.mxu0 0
    %1581 = vmatpush1.bf16.msra.mxu0 %v1408
    %1582 = vmatprep.subr.bf16.mxu0 0
    %1583 = vmatpush1.bf16.msra.mxu0 0
    %1584 = vmatprep.subr.bf16.mxu0 0
    %1585 = vmatpush1.bf16.msra.mxu0 0
    %1586 = vmatprep.subr.bf16.mxu0 0
    %1587 = vmatpush1.bf16.msra.mxu0 0
    %1588 = vmatprep.subr.bf16.mxu0 0
    %1589 = vmatpush1.bf16.msra.mxu0 0
    %1590 = vmatprep.subr.bf16.mxu0 0
    %1591 = vmatpush1.bf16.msra.mxu0 0
    %1592 = vmatprep.subr.bf16.mxu0 0
    %1593 = vmatpush1.bf16.msra.mxu0 0
    %1594 = vmatprep.subr.bf16.mxu0 0
    %1595 = vmatpush1.bf16.msra.mxu0 0
    %1596 = vmatprep.subr.bf16.mxu0 0
    %1597 = vmatpush1.bf16.msra.mxu0 0
    %1598 = vmatprep.subr.bf16.mxu0 0
    %1599 = vmatpush1.bf16.msra.mxu0 0
    %1600 = vmatprep.subr.bf16.mxu0 0
    %1601 = vmatpush1.bf16.msra.mxu0 0
    %1602 = vmatprep.subr.bf16.mxu0 0
    %1603 = vmatpush1.bf16.msra.mxu0 0
    %1604 = vmatprep.subr.bf16.mxu0 0
    %1605 = vmatpush1.bf16.msra.mxu0 0
    %1606 = vmatprep.subr.bf16.mxu0 0
    %1607 = vmatpush1.bf16.msra.mxu0 0
    %1608 = vmatprep.subr.bf16.mxu0 0
    %1609 = vmatpush1.bf16.msra.mxu0 0
    %1610 = vmatprep.mubr.bf16.mxu0 0
    %1611 = vmatmul.mubr.bf16.gmra.mrb[0].mxu0 %v1576
    %v1612 = vpop.f32.mrb[0].mxu0
    %v1613 = vadd.f32 0.0, %v1612
    %v1614 = vpop.f32.mrb[0].mxu0
    %v1615 = vpop.f32.mrb[0].mxu0
    %v1616 = vpop.f32.mrb[0].mxu0
    %1617 = vdwg.mxu0
    %v1619 = vsel %vm1380, %v1572, 0
    %1621 = vmatprep.subr.bf16.mxu0 0
    %1622 = vmatpush1.bf16.msra.mxu0 %v1462
    %1623 = vmatprep.subr.bf16.mxu0 0
    %1624 = vmatpush1.bf16.msra.mxu0 %v1463
    %1625 = vmatprep.subr.bf16.mxu0 0
    %1626 = vmatpush1.bf16.msra.mxu0 0
    %1627 = vmatprep.subr.bf16.mxu0 0
    %1628 = vmatpush1.bf16.msra.mxu0 0
    %1629 = vmatprep.subr.bf16.mxu0 0
    %1630 = vmatpush1.bf16.msra.mxu0 0
    %1631 = vmatprep.subr.bf16.mxu0 0
    %1632 = vmatpush1.bf16.msra.mxu0 0
    %1633 = vmatprep.subr.bf16.mxu0 0
    %1634 = vmatpush1.bf16.msra.mxu0 0
    %1635 = vmatprep.subr.bf16.mxu0 0
    %1636 = vmatpush1.bf16.msra.mxu0 0
    %1637 = vmatprep.subr.bf16.mxu0 0
    %1638 = vmatpush1.bf16.msra.mxu0 0
    %1639 = vmatprep.subr.bf16.mxu0 0
    %1640 = vmatpush1.bf16.msra.mxu0 0
    %1641 = vmatprep.subr.bf16.mxu0 0
    %1642 = vmatpush1.bf16.msra.mxu0 0
    %1643 = vmatprep.subr.bf16.mxu0 0
    %1644 = vmatpush1.bf16.msra.mxu0 0
    %1645 = vmatprep.subr.bf16.mxu0 0
    %1646 = vmatpush1.bf16.msra.mxu0 0
    %1647 = vmatprep.subr.bf16.mxu0 0
    %1648 = vmatpush1.bf16.msra.mxu0 0
    %1649 = vmatprep.subr.bf16.mxu0 0
    %1650 = vmatpush1.bf16.msra.mxu0 0
    %1651 = vmatprep.subr.bf16.mxu0 0
    %1652 = vmatpush1.bf16.msra.mxu0 0
    %1653 = vmatprep.mubr.bf16.mxu0 0
    %1654 = vmatmul.mubr.bf16.gmra.mrb[0].mxu0 %v1619
    %v1655 = vpop.f32.mrb[0].mxu0
    %v1656 = vadd.f32 %v1613, %v1655
    %v1657 = vpop.f32.mrb[0].mxu0
    %v1658 = vpop.f32.mrb[0].mxu0
    %v1659 = vpop.f32.mrb[0].mxu0
    %1660 = vdwg.mxu0
    %v1661 = vld [vmem:[#allocation3 + $0x28] sm:$0xff]
    %v1662 = vpack.c.bf16 %v1661, %v1661
    %v1664 = vsel %vm1380, %v1662, 0
    %1666 = vmatprep.subr.bf16.mxu0 0
    %1667 = vmatpush1.bf16.msra.mxu0 %v1523
    %1668 = vmatprep.subr.bf16.mxu0 0
    %1669 = vmatpush1.bf16.msra.mxu0 %v1524
    %1670 = vmatprep.subr.bf16.mxu0 0
    %1671 = vmatpush1.bf16.msra.mxu0 0
    %1672 = vmatprep.subr.bf16.mxu0 0
    %1673 = vmatpush1.bf16.msra.mxu0 0
    %1674 = vmatprep.subr.bf16.mxu0 0
    %1675 = vmatpush1.bf16.msra.mxu0 0
    %1676 = vmatprep.subr.bf16.mxu0 0
    %1677 = vmatpush1.bf16.msra.mxu0 0
    %1678 = vmatprep.subr.bf16.mxu0 0
    %1679 = vmatpush1.bf16.msra.mxu0 0
    %1680 = vmatprep.subr.bf16.mxu0 0
    %1681 = vmatpush1.bf16.msra.mxu0 0
    %1682 = vmatprep.subr.bf16.mxu0 0
    %1683 = vmatpush1.bf16.msra.mxu0 0
    %1684 = vmatprep.subr.bf16.mxu0 0
    %1685 = vmatpush1.bf16.msra.mxu0 0
    %1686 = vmatprep.subr.bf16.mxu0 0
    %1687 = vmatpush1.bf16.msra.mxu0 0
    %1688 = vmatprep.subr.bf16.mxu0 0
    %1689 = vmatpush1.bf16.msra.mxu0 0
    %1690 = vmatprep.subr.bf16.mxu0 0
    %1691 = vmatpush1.bf16.msra.mxu0 0
    %1692 = vmatprep.subr.bf16.mxu0 0
    %1693 = vmatpush1.bf16.msra.mxu0 0
    %1694 = vmatprep.subr.bf16.mxu0 0
    %1695 = vmatpush1.bf16.msra.mxu0 0
    %1696 = vmatprep.subr.bf16.mxu0 0
    %1697 = vmatpush1.bf16.msra.mxu0 0
    %1698 = vmatprep.mubr.bf16.mxu0 0
    %1699 = vmatmul.mubr.bf16.gmra.mrb[0].mxu0 %v1664
    %v1700 = vpop.f32.mrb[0].mxu0
    %v1701 = vadd.f32 0.0, %v1700
    %v1702 = vpop.f32.mrb[0].mxu0
    %v1703 = vpop.f32.mrb[0].mxu0
    %v1704 = vpop.f32.mrb[0].mxu0
    %1705 = vdwg.mxu0
    %v1706 = vadd.f32 %v1656, %v1701
    %v1707 = vmax.f32 %v1570, %v1706
    %v1708 = vld [vmem:[%s2 + $0x2] sm:$0x1]
    %v1709 = vlaneseq
    %v1710 = vshrl.u32 %v1709, 7
    %v1711 = vsub.s32 0, %v1710
    %v1712 = vrot.slane %v1708, %v1711
    %v1713 = vadd.f32 %v1707, %v1712
    %v1714 = vmax.f32 %v1713, 0.0
    %vm1715 = vcmask 64512
    %1716 = vst.msk [vmem:[#allocation4] sm:$0xff] %vm1715, %v1714
    %v1717 = vld [vmem:[#allocation4] sm:$0x3]
    %v1718 = vpack.c.bf16 %v1717, %v1717
    %v1719 = vld [vmem:[%s2 + $0x8] sm:$0xff]
    %v1720 = vpack.c.bf16 %v1719, %v1719
    %v1721 = vld [vmem:[#allocation4 + $0x2] sm:$0x3]
    %v1722 = vpack.c.bf16 %v1721, %v1721
    %v1723 = vld [vmem:[%s2 + $0x10] sm:$0xff]
    %v1724 = vpack.c.bf16 %v1723, %v1723
    %v1726 = vsel %vm1715, %v1722, 0
    %vm1728 = vcmask 1043456
    %v1730 = vsel %vm1728, %v1724, 0
    %1732 = vmatprep.subr.bf16.mxu0 0
    %1733 = vmatpush1.bf16.msra.mxu0 %v1730
    %1734 = vmatprep.subr.bf16.mxu0 0
    %1735 = vmatpush1.bf16.msra.mxu0 0
    %1736 = vmatprep.subr.bf16.mxu0 0
    %1737 = vmatpush1.bf16.msra.mxu0 0
    %1738 = vmatprep.subr.bf16.mxu0 0
    %1739 = vmatpush1.bf16.msra.mxu0 0
    %1740 = vmatprep.subr.bf16.mxu0 0
    %1741 = vmatpush1.bf16.msra.mxu0 0
    %1742 = vmatprep.subr.bf16.mxu0 0
    %1743 = vmatpush1.bf16.msra.mxu0 0
    %1744 = vmatprep.subr.bf16.mxu0 0
    %1745 = vmatpush1.bf16.msra.mxu0 0
    %1746 = vmatprep.subr.bf16.mxu0 0
    %1747 = vmatpush1.bf16.msra.mxu0 0
    %1748 = vmatprep.subr.bf16.mxu0 0
    %1749 = vmatpush1.bf16.msra.mxu0 0
    %1750 = vmatprep.subr.bf16.mxu0 0
    %1751 = vmatpush1.bf16.msra.mxu0 0
    %1752 = vmatprep.subr.bf16.mxu0 0
    %1753 = vmatpush1.bf16.msra.mxu0 0
    %1754 = vmatprep.subr.bf16.mxu0 0
    %1755 = vmatpush1.bf16.msra.mxu0 0
    %1756 = vmatprep.subr.bf16.mxu0 0
    %1757 = vmatpush1.bf16.msra.mxu0 0
    %1758 = vmatprep.subr.bf16.mxu0 0
    %1759 = vmatpush1.bf16.msra.mxu0 0
    %1760 = vmatprep.subr.bf16.mxu0 0
    %1761 = vmatpush1.bf16.msra.mxu0 0
    %1762 = vmatprep.subr.bf16.mxu0 0
    %1763 = vmatpush1.bf16.msra.mxu0 0
    %1764 = vmatprep.mubr.bf16.mxu0 0
    %1765 = vmatmul.mubr.bf16.gmra.mrb[0].mxu0 %v1726
    %v1766 = vpop.f32.mrb[0].mxu0
    %v1767 = vadd.f32 0.0, %v1766
    %v1768 = vpop.f32.mrb[0].mxu0
    %v1769 = vpop.f32.mrb[0].mxu0
    %v1770 = vpop.f32.mrb[0].mxu0
    %1771 = vdwg.mxu0
    %v1773 = vsel %vm1715, %v1718, 0
    %v1776 = vsel %vm1728, %v1720, 0
    %1778 = vmatprep.subr.bf16.mxu0 0
    %1779 = vmatpush1.bf16.msra.mxu0 %v1776
    %1780 = vmatprep.subr.bf16.mxu0 0
    %1781 = vmatpush1.bf16.msra.mxu0 0
    %1782 = vmatprep.subr.bf16.mxu0 0
    %1783 = vmatpush1.bf16.msra.mxu0 0
    %1784 = vmatprep.subr.bf16.mxu0 0
    %1785 = vmatpush1.bf16.msra.mxu0 0
    %1786 = vmatprep.subr.bf16.mxu0 0
    %1787 = vmatpush1.bf16.msra.mxu0 0
    %1788 = vmatprep.subr.bf16.mxu0 0
    %1789 = vmatpush1.bf16.msra.mxu0 0
    %1790 = vmatprep.subr.bf16.mxu0 0
    %1791 = vmatpush1.bf16.msra.mxu0 0
    %1792 = vmatprep.subr.bf16.mxu0 0
    %1793 = vmatpush1.bf16.msra.mxu0 0
    %1794 = vmatprep.subr.bf16.mxu0 0
    %1795 = vmatpush1.bf16.msra.mxu0 0
    %1796 = vmatprep.subr.bf16.mxu0 0
    %1797 = vmatpush1.bf16.msra.mxu0 0
    %1798 = vmatprep.subr.bf16.mxu0 0
    %1799 = vmatpush1.bf16.msra.mxu0 0
    %1800 = vmatprep.subr.bf16.mxu0 0
    %1801 = vmatpush1.bf16.msra.mxu0 0
    %1802 = vmatprep.subr.bf16.mxu0 0
    %1803 = vmatpush1.bf16.msra.mxu0 0
    %1804 = vmatprep.subr.bf16.mxu0 0
    %1805 = vmatpush1.bf16.msra.mxu0 0
    %1806 = vmatprep.subr.bf16.mxu0 0
    %1807 = vmatpush1.bf16.msra.mxu0 0
    %1808 = vmatprep.subr.bf16.mxu0 0
    %1809 = vmatpush1.bf16.msra.mxu0 0
    %1810 = vmatprep.mubr.bf16.mxu0 0
    %1811 = vmatmul.mubr.bf16.gmra.mrb[0].mxu0 %v1773
    %v1812 = vpop.f32.mrb[0].mxu0
    %v1813 = vadd.f32 %v1767, %v1812
    %v1814 = vpop.f32.mrb[0].mxu0
    %v1815 = vpop.f32.mrb[0].mxu0
    %v1816 = vpop.f32.mrb[0].mxu0
    %1817 = vdwg.mxu0
    %v1818 = vld [vmem:[#allocation4 + $0x4] sm:$0x3]
    %v1819 = vpack.c.bf16 %v1818, %v1818
    %v1820 = vld [vmem:[%s2 + $0x18] sm:$0xff]
    %v1821 = vpack.c.bf16 %v1820, %v1820
    %v1823 = vsel %vm1715, %v1819, 0
    %v1826 = vsel %vm1728, %v1821, 0
    %1828 = vmatprep.subr.bf16.mxu0 0
    %1829 = vmatpush1.bf16.msra.mxu0 %v1826
    %1830 = vmatprep.subr.bf16.mxu0 0
    %1831 = vmatpush1.bf16.msra.mxu0 0
    %1832 = vmatprep.subr.bf16.mxu0 0
    %1833 = vmatpush1.bf16.msra.mxu0 0
    %1834 = vmatprep.subr.bf16.mxu0 0
    %1835 = vmatpush1.bf16.msra.mxu0 0
    %1836 = vmatprep.subr.bf16.mxu0 0
    %1837 = vmatpush1.bf16.msra.mxu0 0
    %1838 = vmatprep.subr.bf16.mxu0 0
    %1839 = vmatpush1.bf16.msra.mxu0 0
    %1840 = vmatprep.subr.bf16.mxu0 0
    %1841 = vmatpush1.bf16.msra.mxu0 0
    %1842 = vmatprep.subr.bf16.mxu0 0
    %1843 = vmatpush1.bf16.msra.mxu0 0
    %1844 = vmatprep.subr.bf16.mxu0 0
    %1845 = vmatpush1.bf16.msra.mxu0 0
    %1846 = vmatprep.subr.bf16.mxu0 0
    %1847 = vmatpush1.bf16.msra.mxu0 0
    %1848 = vmatprep.subr.bf16.mxu0 0
    %1849 = vmatpush1.bf16.msra.mxu0 0
    %1850 = vmatprep.subr.bf16.mxu0 0
    %1851 = vmatpush1.bf16.msra.mxu0 0
    %1852 = vmatprep.subr.bf16.mxu0 0
    %1853 = vmatpush1.bf16.msra.mxu0 0
    %1854 = vmatprep.subr.bf16.mxu0 0
    %1855 = vmatpush1.bf16.msra.mxu0 0
    %1856 = vmatprep.subr.bf16.mxu0 0
    %1857 = vmatpush1.bf16.msra.mxu0 0
    %1858 = vmatprep.subr.bf16.mxu0 0
    %1859 = vmatpush1.bf16.msra.mxu0 0
    %1860 = vmatprep.mubr.bf16.mxu0 0
    %1861 = vmatmul.mubr.bf16.gmra.mrb[0].mxu0 %v1823
    %v1862 = vpop.f32.mrb[0].mxu0
    %v1863 = vadd.f32 0.0, %v1862
    %v1864 = vpop.f32.mrb[0].mxu0
    %v1865 = vpop.f32.mrb[0].mxu0
    %v1866 = vpop.f32.mrb[0].mxu0
    %1867 = vdwg.mxu0
    %v1868 = vadd.f32 %v1813, %v1863
    %v1869 = vld [vmem:[#allocation4 + $0x6] sm:$0x3]
    %v1870 = vpack.c.bf16 %v1869, %v1869
    %v1871 = vld [vmem:[%s2 + $0x20] sm:$0xff]
    %v1872 = vpack.c.bf16 %v1871, %v1871
    %v1874 = vsel %vm1715, %v1870, 0
    %v1877 = vsel %vm1728, %v1872, 0
    %1879 = vmatprep.subr.bf16.mxu0 0
    %1880 = vmatpush1.bf16.msra.mxu0 %v1877
    %1881 = vmatprep.subr.bf16.mxu0 0
    %1882 = vmatpush1.bf16.msra.mxu0 0
    %1883 = vmatprep.subr.bf16.mxu0 0
    %1884 = vmatpush1.bf16.msra.mxu0 0
    %1885 = vmatprep.subr.bf16.mxu0 0
    %1886 = vmatpush1.bf16.msra.mxu0 0
    %1887 = vmatprep.subr.bf16.mxu0 0
    %1888 = vmatpush1.bf16.msra.mxu0 0
    %1889 = vmatprep.subr.bf16.mxu0 0
    %1890 = vmatpush1.bf16.msra.mxu0 0
    %1891 = vmatprep.subr.bf16.mxu0 0
    %1892 = vmatpush1.bf16.msra.mxu0 0
    %1893 = vmatprep.subr.bf16.mxu0 0
    %1894 = vmatpush1.bf16.msra.mxu0 0
    %1895 = vmatprep.subr.bf16.mxu0 0
    %1896 = vmatpush1.bf16.msra.mxu0 0
    %1897 = vmatprep.subr.bf16.mxu0 0
    %1898 = vmatpush1.bf16.msra.mxu0 0
    %1899 = vmatprep.subr.bf16.mxu0 0
    %1900 = vmatpush1.bf16.msra.mxu0 0
    %1901 = vmatprep.subr.bf16.mxu0 0
    %1902 = vmatpush1.bf16.msra.mxu0 0
    %1903 = vmatprep.subr.bf16.mxu0 0
    %1904 = vmatpush1.bf16.msra.mxu0 0
    %1905 = vmatprep.subr.bf16.mxu0 0
    %1906 = vmatpush1.bf16.msra.mxu0 0
    %1907 = vmatprep.subr.bf16.mxu0 0
    %1908 = vmatpush1.bf16.msra.mxu0 0
    %1909 = vmatprep.subr.bf16.mxu0 0
    %1910 = vmatpush1.bf16.msra.mxu0 0
    %1911 = vmatprep.mubr.bf16.mxu0 0
    %1912 = vmatmul.mubr.bf16.gmra.mrb[0].mxu0 %v1874
    %v1913 = vpop.f32.mrb[0].mxu0
    %v1914 = vadd.f32 0.0, %v1913
    %v1915 = vpop.f32.mrb[0].mxu0
    %v1916 = vpop.f32.mrb[0].mxu0
    %v1917 = vpop.f32.mrb[0].mxu0
    %1918 = vdwg.mxu0
    %v1919 = vadd.f32 %v1868, %v1914
    %v1920 = vld [vmem:[%s2 + $0x3] sm:$0x1]
    %v1921 = vlaneseq
    %v1922 = vshrl.u32 %v1921, 7
    %v1923 = vsub.s32 0, %v1922
    %v1924 = vrot.slane %v1920, %v1923
    %v1925 = vadd.f32 %v1919, %v1924
    %v1926 = vmax.f32 %v1925, 0.0
    %v1927 = vpack.c.bf16 %v1926, %v1926
    %v1928 = vld [vmem:[%s1 + $0xf0] sm:$0xf]
    %v1929 = vld [vmem:[%s1 + $0xf4] sm:$0xf]
    %v1930 = vld [vmem:[%s1 + $0xf8] sm:$0xf]
    %v1931 = vld [vmem:[%s1 + $0xfc] sm:$0xf]
    %v1932 = vld [vmem:[%s1 + $0x100] sm:$0xf]
    %v1933 = vld [vmem:[%s1 + $0x104] sm:$0xf]
    %v1934 = vld [vmem:[%s1 + $0x108] sm:$0xf]
    %v1935 = vld [vmem:[%s1 + $0x10c] sm:$0xf]
    %v1936 = vld [vmem:[%s2 + $0x4] sm:$0x1]
    %v1937 = vlaneseq
    %v1938 = vshrl.u32 %v1937, 7
    %v1939 = vsub.s32 0, %v1938
    %v1940 = vrot.slane %v1936, %v1939
    %v1949 = vunpack.c.l.b16 %v1928
    %v1950 = vunpack.c.l.b16 %v1929
    %v1951 = vunpack.c.l.b16 %v1930
    %v1952 = vunpack.c.l.b16 %v1931
    %v1953 = vunpack.c.l.b16 %v1932
    %v1954 = vunpack.c.l.b16 %v1933
    %v1955 = vunpack.c.l.b16 %v1934
    %v1956 = vunpack.c.l.b16 %v1935
    %v1957 = vpack.c.b16 %v1950, %v1949
    %v1958 = vpack.c.b16 %v1952, %v1951
    %v1959 = vpack.c.b16 %v1954, %v1953
    %v1960 = vpack.c.b16 %v1956, %v1955
    %v1966 = vsel %vm310, %v1927, 0
    %1968 = vmatprep.subr.bf16.mxu0 0
    %1969 = vmatpush1.bf16.msra.mxu0 %v1957
    %1970 = vmatprep.subr.bf16.mxu0 0
    %1971 = vmatpush1.bf16.msra.mxu0 %v1958
    %1972 = vmatprep.subr.bf16.mxu0 0
    %1973 = vmatpush1.bf16.msra.mxu0 %v1959
    %1974 = vmatprep.subr.bf16.mxu0 0
    %1975 = vmatpush1.bf16.msra.mxu0 %v1960
    %1976 = vmatprep.subr.bf16.mxu0 0
    %1977 = vmatpush1.bf16.msra.mxu0 0
    %1978 = vmatprep.subr.bf16.mxu0 0
    %1979 = vmatpush1.bf16.msra.mxu0 0
    %1980 = vmatprep.subr.bf16.mxu0 0
    %1981 = vmatpush1.bf16.msra.mxu0 0
    %1982 = vmatprep.subr.bf16.mxu0 0
    %1983 = vmatpush1.bf16.msra.mxu0 0
    %1984 = vmatprep.subr.bf16.mxu0 0
    %1985 = vmatpush1.bf16.msra.mxu0 0
    %1986 = vmatprep.subr.bf16.mxu0 0
    %1987 = vmatpush1.bf16.msra.mxu0 0
    %1988 = vmatprep.subr.bf16.mxu0 0
    %1989 = vmatpush1.bf16.msra.mxu0 0
    %1990 = vmatprep.subr.bf16.mxu0 0
    %1991 = vmatpush1.bf16.msra.mxu0 0
    %1992 = vmatprep.subr.bf16.mxu0 0
    %1993 = vmatpush1.bf16.msra.mxu0 0
    %1994 = vmatprep.subr.bf16.mxu0 0
    %1995 = vmatpush1.bf16.msra.mxu0 0
    %1996 = vmatprep.subr.bf16.mxu0 0
    %1997 = vmatpush1.bf16.msra.mxu0 0
    %1998 = vmatprep.subr.bf16.mxu0 0
    %1999 = vmatpush1.bf16.msra.mxu0 0
    %2000 = vmatprep.mubr.bf16.mxu0 0
    %2001 = vmatmul.mubr.bf16.gmra.mrb[0].mxu0 %v1966
    %v2002 = vpop.f32.mrb[0].mxu0
    %v2003 = vadd.f32 %v1940, %v2002
    %v2004 = vpop.f32.mrb[0].mxu0
    %v2005 = vpop.f32.mrb[0].mxu0
    %v2006 = vpop.f32.mrb[0].mxu0
    %2007 = vdwg.mxu0
    %v2008 = vmax.f32 %v2003, 0.0
    %v2009 = vpack.c.bf16 %v2008, %v2008
    %v2010 = vld [vmem:[%s1 + $0x110] sm:$0xf]
    %v2011 = vld [vmem:[%s1 + $0x114] sm:$0xf]
    %v2012 = vld [vmem:[%s1 + $0x118] sm:$0xf]
    %v2013 = vld [vmem:[%s1 + $0x11c] sm:$0xf]
    %v2014 = vld [vmem:[%s1 + $0x120] sm:$0xf]
    %v2015 = vld [vmem:[%s1 + $0x124] sm:$0xf]
    %v2016 = vld [vmem:[%s1 + $0x128] sm:$0xf]
    %v2017 = vld [vmem:[%s1 + $0x12c] sm:$0xf]
    %v2018 = vld [vmem:[%s1 + $0x130] sm:$0xf]
    %v2019 = vld [vmem:[%s1 + $0x134] sm:$0xf]
    %v2020 = vld [vmem:[%s1 + $0x138] sm:$0x1]
    %v2021 = vld [vmem:[%s2 + $0x5] sm:$0x1]
    %v2022 = vlaneseq
    %v2023 = vshrl.u32 %v2022, 7
    %v2024 = vsub.s32 0, %v2023
    %v2025 = vrot.slane %v2021, %v2024
    %v2037 = vunpack.c.l.b16 %v2010
    %v2038 = vunpack.c.l.b16 %v2011
    %v2039 = vunpack.c.l.b16 %v2012
    %v2040 = vunpack.c.l.b16 %v2013
    %v2041 = vunpack.c.l.b16 %v2014
    %v2042 = vunpack.c.l.b16 %v2015
    %v2043 = vunpack.c.l.b16 %v2016
    %v2044 = vunpack.c.l.b16 %v2017
    %v2045 = vunpack.c.l.b16 %v2018
    %v2046 = vunpack.c.l.b16 %v2019
    %v2047 = vunpack.c.l.b16 %v2020
    %v2048 = vpack.c.b16 %v2038, %v2037
    %v2049 = vpack.c.b16 %v2040, %v2039
    %v2050 = vpack.c.b16 %v2042, %v2041
    %v2051 = vpack.c.b16 %v2044, %v2043
    %v2052 = vpack.c.b16 %v2046, %v2045
    %v2053 = vpack.c.b16 %v2047, %v2047
    %vm2059 = vcmask 662528
    %v2061 = vsel %vm2059, %v2009, 0
    %vm2063 = vcmask 1040384
    %v2064 = vsel 0, 4294967295, 65535
    %v2065 = vsel %vm2063, %v2064, 0
    %v2067 = vand.u32 %v2053, %v2065
    %2069 = vmatprep.subr.bf16.mxu0 0
    %2070 = vmatpush1.bf16.msra.mxu0 %v2048
    %2071 = vmatprep.subr.bf16.mxu0 0
    %2072 = vmatpush1.bf16.msra.mxu0 %v2049
    %2073 = vmatprep.subr.bf16.mxu0 0
    %2074 = vmatpush1.bf16.msra.mxu0 %v2050
    %2075 = vmatprep.subr.bf16.mxu0 0
    %2076 = vmatpush1.bf16.msra.mxu0 %v2051
    %2077 = vmatprep.subr.bf16.mxu0 0
    %2078 = vmatpush1.bf16.msra.mxu0 %v2052
    %2079 = vmatprep.subr.bf16.mxu0 0
    %2080 = vmatpush1.bf16.msra.mxu0 %v2067
    %2081 = vmatprep.subr.bf16.mxu0 0
    %2082 = vmatpush1.bf16.msra.mxu0 0
    %2083 = vmatprep.subr.bf16.mxu0 0
    %2084 = vmatpush1.bf16.msra.mxu0 0
    %2085 = vmatprep.subr.bf16.mxu0 0
    %2086 = vmatpush1.bf16.msra.mxu0 0
    %2087 = vmatprep.subr.bf16.mxu0 0
    %2088 = vmatpush1.bf16.msra.mxu0 0
    %2089 = vmatprep.subr.bf16.mxu0 0
    %2090 = vmatpush1.bf16.msra.mxu0 0
    %2091 = vmatprep.subr.bf16.mxu0 0
    %2092 = vmatpush1.bf16.msra.mxu0 0
    %2093 = vmatprep.subr.bf16.mxu0 0
    %2094 = vmatpush1.bf16.msra.mxu0 0
    %2095 = vmatprep.subr.bf16.mxu0 0
    %2096 = vmatpush1.bf16.msra.mxu0 0
    %2097 = vmatprep.subr.bf16.mxu0 0
    %2098 = vmatpush1.bf16.msra.mxu0 0
    %2099 = vmatprep.subr.bf16.mxu0 0
    %2100 = vmatpush1.bf16.msra.mxu0 0
    %2101 = vmatprep.mubr.bf16.mxu0 0
    %2102 = vmatmul.mubr.bf16.gmra.mrb[0].mxu0 %v2061
    %v2103 = vpop.f32.mrb[0].mxu0
    %v2104 = vadd.f32 %v2025, %v2103
    %v2105 = vpop.f32.mrb[0].mxu0
    %v2106 = vpop.f32.mrb[0].mxu0
    %v2107 = vpop.f32.mrb[0].mxu0
    %2108 = vdwg.mxu0
    %v2109 = vsub.f32 0.0, %v2104
    %v2110 = vmul.f32 %v2109, 1.442695
    %v2111 = vpow.pop %v2110
    %v2112 = vadd.f32 %v2111, 1.0
    %v2113 = vrcp.pop %v2112
    %v2114 = vmul.f32 1.0, %v2113
    %2115 = vst [vmem:[#allocation5] sm:$0x3] %v2114
    // Predicated region
    $region14: #{code_snippet_clf_forward.1} parent=1 // pred_check
      _
    $region15: #{code_snippet_clf_forward.1} parent=1 // pred_check_branch
      %2117 = sbr.rel (0) target = $region17
    $region16: #{code_snippet_clf_forward.1} parent=1 // pred_region
      %s2119 = ssub.s32 32, 32
      %2120 = vsyncadd [#allocation6], %s2119
      %s2122 = sshll.u32 [#allocation5], 4
      %s2123 = int_to_ptr.vmem [resolvable:$true] %s2122
      %2125 = dma.vmem_to_hbm [thread:$0]  %s2123, 32, %s3, [#allocation6]
    $region17: #{code_snippet_clf_forward.1} parent=1 // pred_fallthru
      _
    // Predicated region
    $region18: #{code_snippet_clf_forward.1} parent=1 // pred_check
      _
    $region19: #{code_snippet_clf_forward.1} parent=1 // pred_check_branch
      %2127 = sbr.rel (0) target = $region21
    $region20: #{code_snippet_clf_forward.1} parent=1 // pred_region
      %2128 = dma.done [#allocation6], 32
    $region21: #{code_snippet_clf_forward.1} parent=1 // pred_fallthru
      _
    %2129 = vsyncpa [#allocation6], 1

</llo_original>
